<compile_context>
chip_gen: v7x
topology: tpu7x:2x2x1
jax: 0.10.0
libtpu: 0.0.40
codegen_flags: <defaults>
</compile_context>

<pallas_src>
import math
from functools import partial

import numpy as np
import jax
import jax.numpy as jnp
from jax.experimental import pallas as pl
from jax.experimental.pallas import tpu as pltpu

# ---- logical sizes (from the PyTorch module) --------------------------------
EMB = 300          # embedding size used by the RAT layer (states sliced to :300)
REL = 10           # relationship_number
FF = 1200          # feed-forward hidden size (4 * EMB)
LN_EPS = 1e-5      # torch.nn.LayerNorm default eps

# ---- padded / tiled sizes for TPU -------------------------------------------
DP = 384           # EMB padded to a multiple of 128 lanes
FFP = 1280         # FF padded to a multiple of 128 lanes
RPAD = 128         # relation dim of Wrk^T padded to a full lane tile
RSUB = 16          # relation dim of Wrv padded to a sublane multiple
TM = 128           # query-row tile


def _use_bf16_rel_math():
    """bf16 VALU is native on v6e/v7x; keep relation elementwise math f32 elsewhere."""
    try:
        kind = jax.devices()[0].device_kind.lower()
    except Exception:
        return False
    return ("v6" in kind) or ("v7" in kind)


def _vmem_limit_bytes(lp):
    """Scoped VMEM request: fixed weight residency + LP-scaling residents/scratch."""
    scaling = 2 * (2 * lp * DP * 2 + REL * TM * lp * 2) + 10 * TM * lp * 4
    return int(min(48 * 1024 * 1024, 24 * 1024 * 1024 + scaling))


# ----------------------------------------------------------------------------
# Kernel 1: K / V projection over the full (padded) sequence, row-tiled.
#   Emits K pre-transposed ([DP, TM] blocks of a [DP, LP] array) and V, both bf16.
# ----------------------------------------------------------------------------
def _kv_proj_kernel(x_ref, wk_ref, bk_ref, wv_ref, bv_ref, kt_ref, v_ref):
    x_bf = x_ref[...].astype(jnp.bfloat16)                    # [TM, DP]
    k = jnp.dot(x_bf, wk_ref[...], preferred_element_type=jnp.float32) + bk_ref[...]
    v = jnp.dot(x_bf, wv_ref[...], preferred_element_type=jnp.float32) + bv_ref[...]
    kt_ref[...] = k.T.astype(jnp.bfloat16)                    # [DP, TM] bf16
    v_ref[...] = v.astype(jnp.bfloat16)                       # [TM, DP] bf16


# ----------------------------------------------------------------------------
# Kernel 2: relation-aware attention + FFN for one tile of query rows.
#   x tile [TM, DP] f32, K^T [DP, LP] bf16, V [LP, DP] bf16,
#   rel tile [REL, TM, LP] bf16 (relation-major), mask row [1, LP] f32.
# ----------------------------------------------------------------------------
def _attn_ffn_kernel(x_ref, kt_ref, v_ref, rel_ref, mask_ref,
                     wq_ref, bq_ref, wo_ref, bo_ref, wrk_ref, wrv_ref,
                     w1_ref, b1_ref, w2_ref, b2_ref,
                     ln1g_ref, ln1b_ref, ln2g_ref, ln2b_ref,
                     out_ref, *, rel_bf16_math):
    x = x_ref[...]                                            # [TM, DP] f32
    x_bf = x.astype(jnp.bfloat16)

    # q projection (1/sqrt(300) already folded into wq/bq host-side)
    q = jnp.dot(x_bf, wq_ref[...], preferred_element_type=jnp.float32) + bq_ref[...]
    q_bf = q.astype(jnp.bfloat16)

    # scores = q @ K^T + additive {0,-1e30} key mask              -> [TM, LP]
    scores = jnp.dot(q_bf, kt_ref[...], preferred_element_type=jnp.float32) \
        + mask_ref[...]

    # relation-aware key bias:  bias[i, j] += sum_r qr[i, r] * rel[r, i, j]
    qr = jnp.dot(q_bf, wrk_ref[...], preferred_element_type=jnp.float32)  # [TM, RPAD]
    if rel_bf16_math:
        qr_n = qr.astype(jnp.bfloat16)
        rel_bias = qr_n[:, 0:1] * rel_ref[0]                  # 10 bf16 VPU FMAs
        for r in range(1, REL):
            rel_bias = rel_bias + qr_n[:, r:r + 1] * rel_ref[r]
        scores = scores + rel_bias.astype(jnp.float32)
    else:
        # TODO(synk): on v5e, chunk this loop over the lane axis so the f32
        # accumulator stays vreg-resident (store slot is the binding unit).
        for r in range(REL):
            scores = scores + qr[:, r:r + 1] * rel_ref[r].astype(jnp.float32)

    # softmax (dropout_amount == 0); approx reciprocal is intentional (EUP slot)
    m = jnp.max(scores, axis=-1, keepdims=True)
    e = jnp.exp(scores - m)
    denom = jnp.sum(e, axis=-1, keepdims=True)
    attn = e * pl.reciprocal(denom, approx=True)              # [TM, LP] f32
    attn_bf = attn.astype(jnp.bfloat16)

    # context + relation-aware value bias
    ctx = jnp.dot(attn_bf, v_ref[...], preferred_element_type=jnp.float32)  # [TM, DP]
    if rel_bf16_math:
        ars = [jnp.sum(attn_bf * rel_ref[r], axis=-1, keepdims=True,
                       dtype=jnp.float32) for r in range(REL)]
    else:
        ars = [jnp.sum(attn * rel_ref[r].astype(jnp.float32), axis=-1,
                       keepdims=True) for r in range(REL)]
    # fold the 10 outer-product updates into one [TM, RSUB] @ [RSUB, DP] matmul
    ar_mat = jnp.concatenate(
        ars + [jnp.zeros((TM, RSUB - REL), jnp.float32)], axis=-1)          # [TM, 16]
    ctx = ctx + jnp.dot(ar_mat.astype(jnp.bfloat16), wrv_ref[...],
                        preferred_element_type=jnp.float32)

    attn_out = jnp.dot(ctx.astype(jnp.bfloat16), wo_ref[...],
                       preferred_element_type=jnp.float32) + bo_ref[...]

    # residual + LayerNorm 1 over the logical 300 columns
    # (padded columns of h are exactly 0, so sum/300 and E[x^2]-mu^2 are exact)
    inv_n = 1.0 / EMB
    h = x + attn_out
    mu = jnp.sum(h, axis=-1, keepdims=True) * inv_n
    var = jnp.sum(h * h, axis=-1, keepdims=True) * inv_n - mu * mu
    h = (h - mu) * jax.lax.rsqrt(var + LN_EPS) * ln1g_ref[...] + ln1b_ref[...]

    # feed-forward (ReLU)
    ff = jnp.dot(h.astype(jnp.bfloat16), w1_ref[...],
                 preferred_element_type=jnp.float32) + b1_ref[...]
    ff = jnp.maximum(ff, 0.0)
    ff = jnp.dot(ff.astype(jnp.bfloat16), w2_ref[...],
                 preferred_element_type=jnp.float32) + b2_ref[...]

    # residual + LayerNorm 2
    y = h + ff
    mu2 = jnp.sum(y, axis=-1, keepdims=True) * inv_n
    var2 = jnp.sum(y * y, axis=-1, keepdims=True) * inv_n - mu2 * mu2
    out_ref[...] = (y - mu2) * jax.lax.rsqrt(var2 + LN_EPS) * ln2g_ref[...] + ln2b_ref[...]


# ----------------------------------------------------------------------------
# Wrapper: two pallas_calls (K/V projection, then row-tiled attention + FFN)
# ----------------------------------------------------------------------------
def rat_layer(x_pad, rel_bf16, mask_row, kp, rel_bf16_math):
    """x_pad: [LP, DP] f32, rel_bf16: [REL, LP, LP] bf16, mask_row: [1, LP] f32."""
    LP = x_pad.shape[0]
    n_tiles = LP // TM

    cparams = pltpu.CompilerParams(
        dimension_semantics=("parallel",),          # independent row tiles
        vmem_limit_bytes=_vmem_limit_bytes(LP))

    row_spec = pl.BlockSpec((TM, DP), lambda i: (i, 0))
    kt_spec = pl.BlockSpec((DP, TM), lambda i: (0, i))

    def full(shape):
        nd = len(shape)
        return pl.BlockSpec(shape, lambda i, _nd=nd: (0,) * _nd)

    # ---- phase 1: K^T and V over the whole padded sequence (bf16 outputs) ----
    kt, v = pl.pallas_call(
        _kv_proj_kernel,
        out_shape=(jax.ShapeDtypeStruct((DP, LP), jnp.bfloat16),
                   jax.ShapeDtypeStruct((LP, DP), jnp.bfloat16)),
        grid_spec=pltpu.PrefetchScalarGridSpec(
            num_scalar_prefetch=0, grid=(n_tiles,),
            in_specs=[row_spec,
                      full((DP, DP)), full((1, DP)),
                      full((DP, DP)), full((1, DP))],
            out_specs=[kt_spec, row_spec]),
        compiler_params=cparams,
    )(x_pad, kp["wk"], kp["bk"], kp["wv"], kp["bv"])

    # ---- phase 2: relation-aware attention + FFN, tiled over query rows -------
    rel_spec = pl.BlockSpec((REL, TM, LP), lambda i: (0, i, 0))

    out = pl.pallas_call(
        partial(_attn_ffn_kernel, rel_bf16_math=rel_bf16_math),
        out_shape=jax.ShapeDtypeStruct((LP, DP), jnp.float32),
        grid_spec=pltpu.PrefetchScalarGridSpec(
            num_scalar_prefetch=0, grid=(n_tiles,),
            in_specs=[row_spec, full((DP, LP)), full((LP, DP)), rel_spec,
                      full((1, LP)),                        # additive key mask
                      full((DP, DP)), full((1, DP)),        # wq (scaled), bq
                      full((DP, DP)), full((1, DP)),        # wo, bo
                      full((DP, RPAD)), full((RSUB, DP)),   # wrk_t, wrv
                      full((DP, FFP)), full((1, FFP)),      # w1, b1
                      full((FFP, DP)), full((1, DP)),       # w2, b2
                      full((1, DP)), full((1, DP)),         # ln1 gamma/beta
                      full((1, DP)), full((1, DP))],        # ln2 gamma/beta
            out_specs=row_spec),
        compiler_params=cparams,
    )(x_pad, kt, v, rel_bf16, mask_row,
      kp["wq"], kp["bq"], kp["wo"], kp["bo"],
      kp["wrk_t"], kp["wrv"],
      kp["w1"], kp["b1"], kp["w2"], kp["b2"],
      kp["ln1g"], kp["ln1b"], kp["ln2g"], kp["ln2b"])
    return out


# ----------------------------------------------------------------------------
# Host-side (Python) relationship-matrix construction — mirrors the PyTorch code
# (pure string matching; no tensor compute, so it stays outside the kernel)
# ----------------------------------------------------------------------------
def build_relationship_matrix(input_sequence, unflat_sequence,
                              column_names_surface_form, foreign_keys,
                              relationship_number=REL):
    utterance_len = len(input_sequence)
    schema_len = len(column_names_surface_form)
    L = utterance_len + schema_len
    rel = np.zeros((L, L, relationship_number), dtype=np.float32)

    def get_name(s):
        if s == '*':
            return ('', '')
        table_name, column_num = s.split('.')
        if column_num == '*':
            column_num = ''
        return (table_name, column_num)

    def is_ngram_match(s1, s2, n):
        vis = set()
        for i in range(len(s1) - n + 1):
            vis.add(s1[i:i + n])
        for i in range(len(s2) - n + 1):
            if s2[i:i + n] in vis:
                return True
        return False

    # 0: same table
    for i in range(schema_len):
        table_i, _ = get_name(column_names_surface_form[i])
        idx = i + utterance_len
        for j in range(schema_len):
            table_j, _ = get_name(column_names_surface_form[j])
            jdx = j + utterance_len
            if table_i == table_j:
                rel[idx, jdx, 0] = 1
    # 1: foreign key
    for i, j in foreign_keys:
        idx = i + utterance_len
        jdx = j + utterance_len
        rel[idx, jdx, 1] = 1
        rel[jdx, idx, 1] = 1
    # 2-9: word/table and word/column exact + n-gram matches
    for i in range(schema_len):
        table, column = get_name(column_names_surface_form[i])
        idx = i + utterance_len
        for j in range(len(input_sequence)):
            word = input_sequence[j].lower()
            jdx = j
            no_math = True   # never flipped in the reference either — preserved
            if word == table:
                rel[idx, jdx, 2] = 1
                rel[jdx, idx, 2] = 1
            for n in [5, 4, 3]:
                if no_math and is_ngram_match(word, table, n):
                    rel[idx, jdx, n] = 1
                    rel[jdx, idx, n] = 1
            no_math = True
            if word == column:
                rel[idx, jdx, 6] = 1
                rel[jdx, idx, 6] = 1
            for n in [5, 4, 3]:
                if no_math and is_ngram_match(word, column, n):
                    rel[idx, jdx, 4 + n] = 1
                    rel[jdx, idx, 4 + n] = 1
    # decay of earlier turns (chained-slice in-place semantics of the torch code
    # amount to scaling rows [0:start) each time)
    start = 0
    for seg in unflat_sequence:
        start = len(seg) + start
        rel[0:start] *= 0.98
    return rel


# ----------------------------------------------------------------------------
# Parameter init (deterministic, synthetic), padded to TPU-friendly shapes.
# Padded regions are exactly zero so results equal the unpadded computation.
# ----------------------------------------------------------------------------
def _pad2(a, rows, cols):
    return jnp.pad(a, ((0, rows - a.shape[0]), (0, cols - a.shape[1])))


def init_params(key):
    keys = jax.random.split(key, 8)
    s = 0.02

    def rnd(k, shape):
        return (s * jax.random.normal(k, shape)).astype(jnp.float32)

    def zeros(c):
        return jnp.zeros((1, c), jnp.float32)

    return {
        "wq": _pad2(rnd(keys[0], (EMB, EMB)), DP, DP), "bq": zeros(DP),
        "wk": _pad2(rnd(keys[1], (EMB, EMB)), DP, DP), "bk": zeros(DP),
        "wv": _pad2(rnd(keys[2], (EMB, EMB)), DP, DP), "bv": zeros(DP),
        "wo": _pad2(rnd(keys[3], (EMB, EMB)), DP, DP), "bo": zeros(DP),
        # relation embeddings: Wrk passed pre-transposed [EMB, REL] -> padded [DP, RPAD]
        "wrk_t": _pad2(rnd(keys[4], (EMB, REL)), DP, RPAD),
        "wrv":   _pad2(rnd(keys[5], (REL, EMB)), RSUB, DP),
        "w1": _pad2(rnd(keys[6], (EMB, FF)), DP, FFP), "b1": zeros(FFP),
        "w2": _pad2(rnd(keys[7], (FF, EMB)), FFP, DP), "b2": zeros(DP),
        "ln1g": _pad2(jnp.ones((1, EMB), jnp.float32), 1, DP), "ln1b": zeros(DP),
        "ln2g": _pad2(jnp.ones((1, EMB), jnp.float32), 1, DP), "ln2b": zeros(DP),
    }


def pack_params_for_kernel(params):
    """bf16 weights for the MXU; 1/sqrt(300) score scale folded into wq/bq.
    Biases / LayerNorm affine params stay f32 (tiny, added to f32 accumulators)."""
    scale = 1.0 / math.sqrt(EMB)

    def bf(a):
        return jnp.asarray(a, jnp.bfloat16)

    return {
        "wq": bf(params["wq"] * scale), "bq": params["bq"] * scale,
        "wk": bf(params["wk"]), "bk": params["bk"],
        "wv": bf(params["wv"]), "bv": params["bv"],
        "wo": bf(params["wo"]), "bo": params["bo"],
        "wrk_t": bf(params["wrk_t"]), "wrv": bf(params["wrv"]),
        "w1": bf(params["w1"]), "b1": params["b1"],
        "w2": bf(params["w2"]), "b2": params["b2"],
        "ln1g": params["ln1g"], "ln1b": params["ln1b"],
        "ln2g": params["ln2g"], "ln2b": params["ln2b"],
    }


# ----------------------------------------------------------------------------
# Forward wrapper — mirrors TransformerAttention.forward (dropout_amount = 0)
# ----------------------------------------------------------------------------
def transformer_attention_forward(utterance_states, schema_states, rel_matrix_np, params):
    """utterance_states: [U, 350], schema_states: [S, 300]
       returns (utterance_output [300, U], schema_output [300, S])."""
    assert utterance_states.shape[1] == 350
    u = utterance_states[:, :EMB]                                   # [U, 300]
    x = jnp.concatenate([u, schema_states], axis=0).astype(jnp.float32)  # [L, 300]
    L = x.shape[0]
    LP = ((L + TM - 1) // TM) * TM

    # zero-pad states to [LP, DP]
    x_pad = jnp.zeros((LP, DP), jnp.float32).at[:L, :EMB].set(x)

    # additive key mask row: 0 for logical columns, -1e30 for padded ones
    mask_row = jnp.asarray(
        np.where(np.arange(LP) < L, 0.0, -1e30).astype(np.float32)[None, :])

    # relation tensor: relation-major [REL, LP, LP], bf16 (values are {0, 0.98^k})
    rel_rm = np.transpose(np.asarray(rel_matrix_np, np.float32), (2, 0, 1))
    rel_pad = np.zeros((REL, LP, LP), np.float32)
    rel_pad[:, :L, :L] = rel_rm
    rel_bf16 = jnp.asarray(rel_pad, dtype=jnp.bfloat16)

    kp = pack_params_for_kernel(params)
    out = rat_layer(x_pad, rel_bf16, mask_row, kp,
                    rel_bf16_math=_use_bf16_rel_math())[:L, :EMB]   # [L, 300]
    U = u.shape[0]
    return out[:U, :].T, out[U:, :].T


# ----------------------------------------------------------------------------
# Pure NumPy reference (logical, unpadded shapes) for a correctness check.
# ----------------------------------------------------------------------------
def _np_layernorm(h, g, b):
    mu = h.mean(-1, keepdims=True)
    var = ((h - mu) ** 2).mean(-1, keepdims=True)
    return (h - mu) / np.sqrt(var + LN_EPS) * g + b


def reference_forward(utterance_states, schema_states, rel_np, params):
    p = {k: np.asarray(v) for k, v in params.items()}
    wq, bq = p["wq"][:EMB, :EMB], p["bq"][:, :EMB]
    wk, bk = p["wk"][:EMB, :EMB], p["bk"][:, :EMB]
    wv, bv = p["wv"][:EMB, :EMB], p["bv"][:, :EMB]
    wo, bo = p["wo"][:EMB, :EMB], p["bo"][:, :EMB]
    wrk_t = p["wrk_t"][:EMB, :REL]
    wrv = p["wrv"][:REL, :EMB]
    w1, b1 = p["w1"][:EMB, :FF], p["b1"][:, :FF]
    w2, b2 = p["w2"][:FF, :EMB], p["b2"][:, :EMB]

    u = np.asarray(utterance_states)[:, :EMB]
    x = np.concatenate([u, np.asarray(schema_states)], axis=0).astype(np.float32)
    # match the kernel's bf16 storage of the relation tensor
    rel = np.asarray(jnp.asarray(rel_np, jnp.bfloat16).astype(jnp.float32))

    q = x @ wq + bq
    k = x @ wk + bk
    v = x @ wv + bv
    qr = q @ wrk_t                                                  # [L, R]
    rel_bias = np.einsum("ijr,ir->ij", rel, qr)
    scores = (q @ k.T + rel_bias) / math.sqrt(EMB)
    m = scores.max(-1, keepdims=True)
    e = np.exp(scores - m)
    attn = e / e.sum(-1, keepdims=True)
    ar = np.einsum("ij,ijr->ir", attn, rel)
    ctx = attn @ v + ar @ wrv
    h = _np_layernorm(x + ctx @ wo + bo, p["ln1g"][:, :EMB], p["ln1b"][:, :EMB])
    ff = np.maximum(h @ w1 + b1, 0.0) @ w2 + b2
    y = _np_layernorm(h + ff, p["ln2g"][:, :EMB], p["ln2b"][:, :EMB])
    U = u.shape[0]
    return y[:U].T, y[U:].T


if __name__ == "__main__":
    key = jax.random.PRNGKey(0)
    k_u, k_s, k_p = jax.random.split(key, 3)

    # small synthetic "SQL" example
    input_sequence = ["show", "name", "of", "singer", "concert", "stadium"]
    unflat_sequence = [["show", "name", "of"], ["singer", "concert", "stadium"]]
    column_names_surface_form = ["*", "singer.name", "singer.age",
                                 "concert.name", "concert.stadium_id"]
    foreign_keys = [[4, 2]]

    utterance_len = len(input_sequence)           # 6
    schema_len = len(column_names_surface_form)   # 5

    utterance_states = jax.random.normal(k_u, (utterance_len, 350), jnp.float32)
    schema_states = jax.random.normal(k_s, (schema_len, EMB), jnp.float32)

    rel_np = build_relationship_matrix(input_sequence, unflat_sequence,
                                       column_names_surface_form, foreign_keys)
    params = init_params(k_p)

    utt_out, sch_out = transformer_attention_forward(
        utterance_states, schema_states, rel_np, params)
    utt_out = np.asarray(jax.block_until_ready(utt_out))
    sch_out = np.asarray(jax.block_until_ready(sch_out))

    assert utt_out.shape == (EMB, utterance_len)
    assert sch_out.shape == (EMB, schema_len)
    assert np.all(np.isfinite(utt_out)) and np.all(np.isfinite(sch_out))

    ref_u, ref_s = reference_forward(np.asarray(utterance_states),
                                     np.asarray(schema_states), rel_np, params)
    assert np.allclose(utt_out, ref_u, rtol=2e-2, atol=2e-2)
    assert np.allclose(sch_out, ref_s, rtol=2e-2, atol=2e-2)
    print("KERNEL_OK")
</pallas_src>

<mosaic_0001>
module attributes {stable_mosaic.version = 11 : i64} {
  func.func @_kv_proj_kernel(%arg0: i32, %arg1: memref<128x384xf32, #tpu.memory_space<vmem>>, %arg2: memref<384x384xbf16, #tpu.memory_space<vmem>>, %arg3: memref<1x384xf32, #tpu.memory_space<vmem>>, %arg4: memref<384x384xbf16, #tpu.memory_space<vmem>>, %arg5: memref<1x384xf32, #tpu.memory_space<vmem>>, %arg6: memref<384x128xbf16, #tpu.memory_space<vmem>>, %arg7: memref<128x384xbf16, #tpu.memory_space<vmem>>) attributes {dimension_semantics = [#tpu.dimension_semantics<parallel>], iteration_bounds = array<i64: 1>, scalar_prefetch = 0 : i64, scratch_operands = 0 : i64, tpu.core_type = #tpu.core_type<tc>, window_params = [{transform_indices = @transform_0, window_bounds = array<i64: 128, 384>}, {pipeline_mode = #tpu.pipeline_mode<synchronous>, transform_indices = @transform_1, window_bounds = array<i64: 384, 384>}, {pipeline_mode = #tpu.pipeline_mode<synchronous>, transform_indices = @transform_2, window_bounds = array<i64: 1, 384>}, {pipeline_mode = #tpu.pipeline_mode<synchronous>, transform_indices = @transform_3, window_bounds = array<i64: 384, 384>}, {pipeline_mode = #tpu.pipeline_mode<synchronous>, transform_indices = @transform_4, window_bounds = array<i64: 1, 384>}, {transform_indices = @transform_5, window_bounds = array<i64: 384, 128>}, {transform_indices = @transform_6, window_bounds = array<i64: 128, 384>}]} {
    %c0 = arith.constant 0 : index
    %c0_0 = arith.constant 0 : index
    %0 = vector.load %arg1[%c0, %c0_0] : memref<128x384xf32, #tpu.memory_space<vmem>>, vector<128x384xf32>
    %1 = arith.truncf %0 : vector<128x384xf32> to vector<128x384xbf16>
    %c0_1 = arith.constant 0 : index
    %c0_2 = arith.constant 0 : index
    %2 = vector.load %arg2[%c0_1, %c0_2] : memref<384x384xbf16, #tpu.memory_space<vmem>>, vector<384x384xbf16>
    %cst = arith.constant dense<0.000000e+00> : vector<128x384xf32>
    %3 = tpu.matmul %1, %2, %cst {dimension_numbers = #tpu.dot_dimension_numbers<[1], [0], [0], [1], [0, 0, 1, 1], [], []>} : vector<128x384xbf16>, vector<384x384xbf16>, vector<128x384xf32> -> vector<128x384xf32>
    %c0_3 = arith.constant 0 : index
    %c0_4 = arith.constant 0 : index
    %4 = vector.load %arg3[%c0_3, %c0_4] : memref<1x384xf32, #tpu.memory_space<vmem>>, vector<1x384xf32>
    %5 = vector.broadcast %4 : vector<1x384xf32> to vector<128x384xf32>
    %6 = arith.addf %3, %5 : vector<128x384xf32>
    %c0_5 = arith.constant 0 : index
    %c0_6 = arith.constant 0 : index
    %7 = vector.load %arg4[%c0_5, %c0_6] : memref<384x384xbf16, #tpu.memory_space<vmem>>, vector<384x384xbf16>
    %cst_7 = arith.constant dense<0.000000e+00> : vector<128x384xf32>
    %8 = tpu.matmul %1, %7, %cst_7 {dimension_numbers = #tpu.dot_dimension_numbers<[1], [0], [0], [1], [0, 0, 1, 1], [], []>} : vector<128x384xbf16>, vector<384x384xbf16>, vector<128x384xf32> -> vector<128x384xf32>
    %c0_8 = arith.constant 0 : index
    %c0_9 = arith.constant 0 : index
    %9 = vector.load %arg5[%c0_8, %c0_9] : memref<1x384xf32, #tpu.memory_space<vmem>>, vector<1x384xf32>
    %10 = vector.broadcast %9 : vector<1x384xf32> to vector<128x384xf32>
    %11 = arith.addf %8, %10 : vector<128x384xf32>
    %12 = tpu.transpose %6, [1, 0] : vector<128x384xf32> -> vector<384x128xf32>
    %13 = arith.truncf %12 : vector<384x128xf32> to vector<384x128xbf16>
    %c0_10 = arith.constant 0 : index
    %c0_11 = arith.constant 0 : index
    %14 = vector.load %arg6[%c0_10, %c0_11] : memref<384x128xbf16, #tpu.memory_space<vmem>>, vector<384x128xbf16>
    tpu.vector_store %arg6[%c0_10, %c0_11], %13 {strides = array<i32>} : memref<384x128xbf16, #tpu.memory_space<vmem>>, vector<384x128xbf16>,
    %15 = arith.truncf %11 : vector<128x384xf32> to vector<128x384xbf16>
    %c0_12 = arith.constant 0 : index
    %c0_13 = arith.constant 0 : index
    %16 = vector.load %arg7[%c0_12, %c0_13] : memref<128x384xbf16, #tpu.memory_space<vmem>>, vector<128x384xbf16>
    tpu.vector_store %arg7[%c0_12, %c0_13], %15 {strides = array<i32>} : memref<128x384xbf16, #tpu.memory_space<vmem>>, vector<128x384xbf16>,
    return
  }
  func.func @transform_0(%arg0: i32) -> (i32, i32) {
    %c0_i32 = arith.constant 0 : i32
    %c0_i32_0 = arith.constant 0 : i32
    return %arg0, %c0_i32 : i32, i32
  }
  func.func @transform_1(%arg0: i32) -> (i32, i32) {
    %c0_i32 = arith.constant 0 : i32
    %c0_i32_0 = arith.constant 0 : i32
    %c0_i32_1 = arith.constant 0 : i32
    return %c0_i32, %c0_i32_0 : i32, i32
  }
  func.func @transform_2(%arg0: i32) -> (i32, i32) {
    %c0_i32 = arith.constant 0 : i32
    %c0_i32_0 = arith.constant 0 : i32
    %c0_i32_1 = arith.constant 0 : i32
    return %c0_i32, %c0_i32_0 : i32, i32
  }
  func.func @transform_3(%arg0: i32) -> (i32, i32) {
    %c0_i32 = arith.constant 0 : i32
    %c0_i32_0 = arith.constant 0 : i32
    %c0_i32_1 = arith.constant 0 : i32
    return %c0_i32, %c0_i32_0 : i32, i32
  }
  func.func @transform_4(%arg0: i32) -> (i32, i32) {
    %c0_i32 = arith.constant 0 : i32
    %c0_i32_0 = arith.constant 0 : i32
    %c0_i32_1 = arith.constant 0 : i32
    return %c0_i32, %c0_i32_0 : i32, i32
  }
  func.func @transform_5(%arg0: i32) -> (i32, i32) {
    %c0_i32 = arith.constant 0 : i32
    %c0_i32_0 = arith.constant 0 : i32
    return %c0_i32, %arg0 : i32, i32
  }
  func.func @transform_6(%arg0: i32) -> (i32, i32) {
    %c0_i32 = arith.constant 0 : i32
    %c0_i32_0 = arith.constant 0 : i32
    return %arg0, %c0_i32 : i32, i32
  }
}

</mosaic_0001>

<llo_original>
// kernel: tpu_custom_call.1
$region0: #{tpu_custom_call.1}
  #allocation0 [shape = 'u32[]', space=smem, size = 0x4, offset = 0x4, fixed_abs, tag = 'smem constant byte address 0x4 - core index']
  #allocation1 [shape = 'u32[144,128]{1,0:T(1,128)}', space=vmem, size = 0x12000, scoped, tag = 'internal scratch']
  %s0 = inlined_call_operand.hbm [shape: f32[128,384], index: 0, kind: input, shape index: {}]
  %s1 = inlined_call_operand.hbm [shape: bf16[384,384], index: 1, kind: input, shape index: {}]
  %s2 = inlined_call_operand.vmem [shape: f32[1,384], index: 2, kind: input, shape index: {}]
  %s3 = inlined_call_operand.hbm [shape: bf16[384,384], index: 3, kind: input, shape index: {}]
  %s4 = inlined_call_operand.vmem [shape: f32[1,384], index: 4, kind: input, shape index: {}]
  %s5 = inlined_call_operand.hbm [shape: bf16[384,128], index: 5, kind: output, shape index: {0}]
  %s6 = inlined_call_operand.hbm [shape: bf16[128,384], index: 6, kind: output, shape index: {1}]
  %7 = xla_tuple %s5, %s6
  %s8 = sld [smem:[#allocation0]]
  $region50: #{tpu_custom_call.1} parent=0
    _
  %s10 = ssub.s32 1, %s8
  %s11 = scalar_select 0, %s10, %s8
  $region1: #{tpu_custom_call.1} parent=0
    #allocation2 [shape = 'u8[196608]{0}', space=vmem, size = 0x30000, scoped, tag = 'input window, operand 0, single buffered']
    #allocation3 [shape = 's32[1]{0}', space=sflag, size = 0x4, scoped, tag = 'scoped memory for tpu_custom_call.1']
    #allocation4 [shape = 's32[1]{0}', space=sflag, size = 0x4, scoped, tag = 'scoped memory for tpu_custom_call.1']
    #allocation5 [shape = 'u8[294912]{0}', space=vmem, size = 0x48000, scoped, tag = 'input window, operand 1, single buffered']
    #allocation6 [shape = 's32[1]{0}', space=sflag, size = 0x4, scoped, tag = 'scoped memory for tpu_custom_call.1']
    #allocation7 [shape = 'u8[294912]{0}', space=vmem, size = 0x48000, scoped, tag = 'input window, operand 3, single buffered']
    #allocation8 [shape = 'u8[98304]{0}', space=vmem, size = 0x18000, scoped, tag = 'output window, operand 0, single buffered']
    #allocation9 [shape = 'u8[98304]{0}', space=vmem, size = 0x18000, scoped, tag = 'output window, operand 1, single buffered']
    #allocation10 [shape = 's32[1]{0}', space=sflag, size = 0x4, scoped, tag = 'scoped memory for tpu_custom_call.1']
    %12 = vsyncpa [#allocation3], 0
    %13 = vsyncpa [#allocation6], 0
    %14 = vsyncpa [#allocation4], 0
    %15 = vsyncpa [#allocation10], 0
    // Predicated region
    $region2: #{tpu_custom_call.1} parent=1 // pred_check
      _
    $region3: #{tpu_custom_call.1} parent=1 // pred_check_branch
      %17 = sbr.rel (0) target = $region5
    $region4: #{tpu_custom_call.1} parent=1 // pred_region
      %s19 = ssub.s32 6144, 6144
      %20 = vsyncadd [#allocation3], %s19
      %s21 = sshll.u32 [#allocation2], 4
      %s22 = int_to_ptr.vmem [resolvable:$true] %s21
      %27 = dma.hbm_to_vmem [thread:$0]  %s0, 6144, %s22, [#allocation3], 384, 384, 24
    $region5: #{tpu_custom_call.1} parent=1 // pred_fallthru
      _
    // Predicated region
    $region6: #{tpu_custom_call.1} parent=1 // pred_check
      _
    $region7: #{tpu_custom_call.1} parent=1 // pred_check_branch
      %29 = sbr.rel (0) target = $region9
    $region8: #{tpu_custom_call.1} parent=1 // pred_region
      %s31 = ssub.s32 9216, 9216
      %32 = vsyncadd [#allocation6], %s31
      %s33 = sshll.u32 [#allocation5], 4
      %s34 = int_to_ptr.vmem [resolvable:$true] %s33
      %39 = dma.hbm_to_vmem [thread:$0]  %s1, 9216, %s34, [#allocation6], 192, 192, 12
    $region9: #{tpu_custom_call.1} parent=1 // pred_fallthru
      _
    // Predicated region
    $region10: #{tpu_custom_call.1} parent=1 // pred_check
      _
    $region11: #{tpu_custom_call.1} parent=1 // pred_check_branch
      %41 = sbr.rel (0) target = $region13
    $region12: #{tpu_custom_call.1} parent=1 // pred_region
      _
    $region13: #{tpu_custom_call.1} parent=1 // pred_fallthru
      _
    // Predicated region
    $region14: #{tpu_custom_call.1} parent=1 // pred_check
      _
    $region15: #{tpu_custom_call.1} parent=1 // pred_check_branch
      %43 = sbr.rel (0) target = $region17
    $region16: #{tpu_custom_call.1} parent=1 // pred_region
      %s45 = ssub.s32 9216, 9216
      %46 = vsyncadd [#allocation6], %s45
      %s47 = sshll.u32 [#allocation7], 4
      %s48 = int_to_ptr.vmem [resolvable:$true] %s47
      %53 = dma.hbm_to_vmem [thread:$0]  %s3, 9216, %s48, [#allocation6], 192, 192, 12
    $region17: #{tpu_custom_call.1} parent=1 // pred_fallthru
      _
    // Predicated region
    $region18: #{tpu_custom_call.1} parent=1 // pred_check
      _
    $region19: #{tpu_custom_call.1} parent=1 // pred_check_branch
      %55 = sbr.rel (0) target = $region21
    $region20: #{tpu_custom_call.1} parent=1 // pred_region
      _
    $region21: #{tpu_custom_call.1} parent=1 // pred_fallthru
      _
    // Predicated region
    $region22: #{tpu_custom_call.1} parent=1 // pred_check
      _
    $region23: #{tpu_custom_call.1} parent=1 // pred_check_branch
      %57 = sbr.rel (0) target = $region25
    $region24: #{tpu_custom_call.1} parent=1 // pred_region
      %58 = dma.done [#allocation3], 6144
    $region25: #{tpu_custom_call.1} parent=1 // pred_fallthru
      _
    // Predicated region
    $region26: #{tpu_custom_call.1} parent=1 // pred_check
      _
    $region27: #{tpu_custom_call.1} parent=1 // pred_check_branch
      %60 = sbr.rel (0) target = $region29
    $region28: #{tpu_custom_call.1} parent=1 // pred_region
      %61 = dma.done [#allocation6], 9216
    $region29: #{tpu_custom_call.1} parent=1 // pred_fallthru
      _
    // Predicated region
    $region30: #{tpu_custom_call.1} parent=1 // pred_check
      _
    $region31: #{tpu_custom_call.1} parent=1 // pred_check_branch
      %63 = sbr.rel (0) target = $region33
    $region32: #{tpu_custom_call.1} parent=1 // pred_region
      %64 = dma.done [#allocation6], 9216
    $region33: #{tpu_custom_call.1} parent=1 // pred_fallthru
      _
    %v66 = vld [vmem:[#allocation2] sm:$0xff]
    %v67 = vld [vmem:[#allocation2 + $0x8] sm:$0xff]
    %v68 = vld [vmem:[#allocation2 + $0x10] sm:$0xff]
    %v69 = vld [vmem:[#allocation2 + $0x18] sm:$0xff]
    %v70 = vld [vmem:[#allocation2 + $0x20] sm:$0xff]
    %v71 = vld [vmem:[#allocation2 + $0x28] sm:$0xff]
    %v72 = vld [vmem:[#allocation2 + $0x30] sm:$0xff]
    %v73 = vld [vmem:[#allocation2 + $0x38] sm:$0xff]
    %v74 = vld [vmem:[#allocation2 + $0x40] sm:$0xff]
    %v75 = vld [vmem:[#allocation2 + $0x48] sm:$0xff]
    %v76 = vld [vmem:[#allocation2 + $0x50] sm:$0xff]
    %v77 = vld [vmem:[#allocation2 + $0x58] sm:$0xff]
    %v78 = vld [vmem:[#allocation2 + $0x60] sm:$0xff]
    %v79 = vld [vmem:[#allocation2 + $0x68] sm:$0xff]
    %v80 = vld [vmem:[#allocation2 + $0x70] sm:$0xff]
    %v81 = vld [vmem:[#allocation2 + $0x78] sm:$0xff]
    %v82 = vld [vmem:[#allocation2 + $0x80] sm:$0xff]
    %v83 = vld [vmem:[#allocation2 + $0x88] sm:$0xff]
    %v84 = vld [vmem:[#allocation2 + $0x90] sm:$0xff]
    %v85 = vld [vmem:[#allocation2 + $0x98] sm:$0xff]
    %v86 = vld [vmem:[#allocation2 + $0xa0] sm:$0xff]
    %v87 = vld [vmem:[#allocation2 + $0xa8] sm:$0xff]
    %v88 = vld [vmem:[#allocation2 + $0xb0] sm:$0xff]
    %v89 = vld [vmem:[#allocation2 + $0xb8] sm:$0xff]
    %v90 = vld [vmem:[#allocation2 + $0xc0] sm:$0xff]
    %v91 = vld [vmem:[#allocation2 + $0xc8] sm:$0xff]
    %v92 = vld [vmem:[#allocation2 + $0xd0] sm:$0xff]
    %v93 = vld [vmem:[#allocation2 + $0xd8] sm:$0xff]
    %v94 = vld [vmem:[#allocation2 + $0xe0] sm:$0xff]
    %v95 = vld [vmem:[#allocation2 + $0xe8] sm:$0xff]
    %v96 = vld [vmem:[#allocation2 + $0xf0] sm:$0xff]
    %v97 = vld [vmem:[#allocation2 + $0xf8] sm:$0xff]
    %v98 = vld [vmem:[#allocation2 + $0x100] sm:$0xff]
    %v99 = vld [vmem:[#allocation2 + $0x108] sm:$0xff]
    %v100 = vld [vmem:[#allocation2 + $0x110] sm:$0xff]
    %v101 = vld [vmem:[#allocation2 + $0x118] sm:$0xff]
    %v102 = vld [vmem:[#allocation2 + $0x120] sm:$0xff]
    %v103 = vld [vmem:[#allocation2 + $0x128] sm:$0xff]
    %v104 = vld [vmem:[#allocation2 + $0x130] sm:$0xff]
    %v105 = vld [vmem:[#allocation2 + $0x138] sm:$0xff]
    %v106 = vld [vmem:[#allocation2 + $0x140] sm:$0xff]
    %v107 = vld [vmem:[#allocation2 + $0x148] sm:$0xff]
    %v108 = vld [vmem:[#allocation2 + $0x150] sm:$0xff]
    %v109 = vld [vmem:[#allocation2 + $0x158] sm:$0xff]
    %v110 = vld [vmem:[#allocation2 + $0x160] sm:$0xff]
    %v111 = vld [vmem:[#allocation2 + $0x168] sm:$0xff]
    %v112 = vld [vmem:[#allocation2 + $0x170] sm:$0xff]
    %v113 = vld [vmem:[#allocation2 + $0x178] sm:$0xff]
    %v114 = vpack.c.bf16 %v69, %v66
    %v115 = vpack.c.bf16 %v70, %v67
    %v116 = vpack.c.bf16 %v71, %v68
    %v117 = vpack.c.bf16 %v75, %v72
    %v118 = vpack.c.bf16 %v76, %v73
    %v119 = vpack.c.bf16 %v77, %v74
    %v120 = vpack.c.bf16 %v81, %v78
    %v121 = vpack.c.bf16 %v82, %v79
    %v122 = vpack.c.bf16 %v83, %v80
    %v123 = vpack.c.bf16 %v87, %v84
    %v124 = vpack.c.bf16 %v88, %v85
    %v125 = vpack.c.bf16 %v89, %v86
    %v126 = vpack.c.bf16 %v93, %v90
    %v127 = vpack.c.bf16 %v94, %v91
    %v128 = vpack.c.bf16 %v95, %v92
    %v129 = vpack.c.bf16 %v99, %v96
    %v130 = vpack.c.bf16 %v100, %v97
    %v131 = vpack.c.bf16 %v101, %v98
    %v132 = vpack.c.bf16 %v105, %v102
    %v133 = vpack.c.bf16 %v106, %v103
    %v134 = vpack.c.bf16 %v107, %v104
    %v135 = vpack.c.bf16 %v111, %v108
    %v136 = vpack.c.bf16 %v112, %v109
    %v137 = vpack.c.bf16 %v113, %v110
    %v138 = vld [vmem:[#allocation5] sm:$0xff]
    %v139 = vld [vmem:[#allocation5 + $0x8] sm:$0xf]
    %v140 = vld [vmem:[#allocation5 + $0xc] sm:$0xff]
    %v141 = vld [vmem:[#allocation5 + $0x14] sm:$0xf]
    %v142 = vld [vmem:[#allocation5 + $0x18] sm:$0xff]
    %v143 = vld [vmem:[#allocation5 + $0x20] sm:$0xf]
    %v144 = vld [vmem:[#allocation5 + $0x24] sm:$0xff]
    %v145 = vld [vmem:[#allocation5 + $0x2c] sm:$0xf]
    %v146 = vld [vmem:[#allocation5 + $0x30] sm:$0xff]
    %v147 = vld [vmem:[#allocation5 + $0x38] sm:$0xf]
    %v148 = vld [vmem:[#allocation5 + $0x3c] sm:$0xff]
    %v149 = vld [vmem:[#allocation5 + $0x44] sm:$0xf]
    %v150 = vld [vmem:[#allocation5 + $0x48] sm:$0xff]
    %v151 = vld [vmem:[#allocation5 + $0x50] sm:$0xf]
    %v152 = vld [vmem:[#allocation5 + $0x54] sm:$0xff]
    %v153 = vld [vmem:[#allocation5 + $0x5c] sm:$0xf]
    %v154 = vld [vmem:[#allocation5 + $0x60] sm:$0xff]
    %v155 = vld [vmem:[#allocation5 + $0x68] sm:$0xf]
    %v156 = vld [vmem:[#allocation5 + $0x6c] sm:$0xff]
    %v157 = vld [vmem:[#allocation5 + $0x74] sm:$0xf]
    %v158 = vld [vmem:[#allocation5 + $0x78] sm:$0xff]
    %v159 = vld [vmem:[#allocation5 + $0x80] sm:$0xf]
    %v160 = vld [vmem:[#allocation5 + $0x84] sm:$0xff]
    %v161 = vld [vmem:[#allocation5 + $0x8c] sm:$0xf]
    %v162 = vld [vmem:[#allocation5 + $0x90] sm:$0xff]
    %v163 = vld [vmem:[#allocation5 + $0x98] sm:$0xf]
    %v164 = vld [vmem:[#allocation5 + $0x9c] sm:$0xff]
    %v165 = vld [vmem:[#allocation5 + $0xa4] sm:$0xf]
    %v166 = vld [vmem:[#allocation5 + $0xa8] sm:$0xff]
    %v167 = vld [vmem:[#allocation5 + $0xb0] sm:$0xf]
    %v168 = vld [vmem:[#allocation5 + $0xb4] sm:$0xff]
    %v169 = vld [vmem:[#allocation5 + $0xbc] sm:$0xf]
    %v170 = vld [vmem:[#allocation5 + $0xc0] sm:$0xff]
    %v171 = vld [vmem:[#allocation5 + $0xc8] sm:$0xf]
    %v172 = vld [vmem:[#allocation5 + $0xcc] sm:$0xff]
    %v173 = vld [vmem:[#allocation5 + $0xd4] sm:$0xf]
    %v174 = vld [vmem:[#allocation5 + $0xd8] sm:$0xff]
    %v175 = vld [vmem:[#allocation5 + $0xe0] sm:$0xf]
    %v176 = vld [vmem:[#allocation5 + $0xe4] sm:$0xff]
    %v177 = vld [vmem:[#allocation5 + $0xec] sm:$0xf]
    %v178 = vld [vmem:[#allocation5 + $0xf0] sm:$0xff]
    %v179 = vld [vmem:[#allocation5 + $0xf8] sm:$0xf]
    %v180 = vld [vmem:[#allocation5 + $0xfc] sm:$0xff]
    %v181 = vld [vmem:[#allocation5 + $0x104] sm:$0xf]
    %v182 = vld [vmem:[#allocation5 + $0x108] sm:$0xff]
    %v183 = vld [vmem:[#allocation5 + $0x110] sm:$0xf]
    %v184 = vld [vmem:[#allocation5 + $0x114] sm:$0xff]
    %v185 = vld [vmem:[#allocation5 + $0x11c] sm:$0xf]
    %v186 = vld [vmem:[#allocation5 + $0x120] sm:$0xff]
    %v187 = vld [vmem:[#allocation5 + $0x128] sm:$0xf]
    %v188 = vld [vmem:[#allocation5 + $0x12c] sm:$0xff]
    %v189 = vld [vmem:[#allocation5 + $0x134] sm:$0xf]
    %v190 = vld [vmem:[#allocation5 + $0x138] sm:$0xff]
    %v191 = vld [vmem:[#allocation5 + $0x140] sm:$0xf]
    %v192 = vld [vmem:[#allocation5 + $0x144] sm:$0xff]
    %v193 = vld [vmem:[#allocation5 + $0x14c] sm:$0xf]
    %v194 = vld [vmem:[#allocation5 + $0x150] sm:$0xff]
    %v195 = vld [vmem:[#allocation5 + $0x158] sm:$0xf]
    %v196 = vld [vmem:[#allocation5 + $0x15c] sm:$0xff]
    %v197 = vld [vmem:[#allocation5 + $0x164] sm:$0xf]
    %v198 = vld [vmem:[#allocation5 + $0x168] sm:$0xff]
    %v199 = vld [vmem:[#allocation5 + $0x170] sm:$0xf]
    %v200 = vld [vmem:[#allocation5 + $0x174] sm:$0xff]
    %v201 = vld [vmem:[#allocation5 + $0x17c] sm:$0xf]
    %v202 = vld [vmem:[#allocation5 + $0x180] sm:$0xff]
    %v203 = vld [vmem:[#allocation5 + $0x188] sm:$0xf]
    %v204 = vld [vmem:[#allocation5 + $0x18c] sm:$0xff]
    %v205 = vld [vmem:[#allocation5 + $0x194] sm:$0xf]
    %v206 = vld [vmem:[#allocation5 + $0x198] sm:$0xff]
    %v207 = vld [vmem:[#allocation5 + $0x1a0] sm:$0xf]
    %v208 = vld [vmem:[#allocation5 + $0x1a4] sm:$0xff]
    %v209 = vld [vmem:[#allocation5 + $0x1ac] sm:$0xf]
    %v210 = vld [vmem:[#allocation5 + $0x1b0] sm:$0xff]
    %v211 = vld [vmem:[#allocation5 + $0x1b8] sm:$0xf]
    %v212 = vld [vmem:[#allocation5 + $0x1bc] sm:$0xff]
    %v213 = vld [vmem:[#allocation5 + $0x1c4] sm:$0xf]
    %v214 = vld [vmem:[#allocation5 + $0x1c8] sm:$0xff]
    %v215 = vld [vmem:[#allocation5 + $0x1d0] sm:$0xf]
    %v216 = vld [vmem:[#allocation5 + $0x1d4] sm:$0xff]
    %v217 = vld [vmem:[#allocation5 + $0x1dc] sm:$0xf]
    %v218 = vld [vmem:[#allocation5 + $0x1e0] sm:$0xff]
    %v219 = vld [vmem:[#allocation5 + $0x1e8] sm:$0xf]
    %v220 = vld [vmem:[#allocation5 + $0x1ec] sm:$0xff]
    %v221 = vld [vmem:[#allocation5 + $0x1f4] sm:$0xf]
    %v222 = vld [vmem:[#allocation5 + $0x1f8] sm:$0xff]
    %v223 = vld [vmem:[#allocation5 + $0x200] sm:$0xf]
    %v224 = vld [vmem:[#allocation5 + $0x204] sm:$0xff]
    %v225 = vld [vmem:[#allocation5 + $0x20c] sm:$0xf]
    %v226 = vld [vmem:[#allocation5 + $0x210] sm:$0xff]
    %v227 = vld [vmem:[#allocation5 + $0x218] sm:$0xf]
    %v228 = vld [vmem:[#allocation5 + $0x21c] sm:$0xff]
    %v229 = vld [vmem:[#allocation5 + $0x224] sm:$0xf]
    %v230 = vld [vmem:[#allocation5 + $0x228] sm:$0xff]
    %v231 = vld [vmem:[#allocation5 + $0x230] sm:$0xf]
    %v232 = vld [vmem:[#allocation5 + $0x234] sm:$0xff]
    %v233 = vld [vmem:[#allocation5 + $0x23c] sm:$0xf]
    %v234 = vld [vmem:[%s2] sm:$0x7]
    %v236 = vlaneseq
    %v237 = vshrl.u32 %v236, 7
    %v238 = vsub.s32 0, %v237
    %v239 = vrot.slane %v234, %v238
    %v240 = vlaneseq
    %v241 = vshrl.u32 %v240, 7
    %v242 = vsub.s32 1, %v241
    %v243 = vrot.slane %v234, %v242
    %v244 = vlaneseq
    %v245 = vshrl.u32 %v244, 7
    %v246 = vsub.s32 2, %v245
    %v247 = vrot.slane %v234, %v246
    %v347 = vunpack.c.l.b16 %v138
    %v348 = vunpack.c.h.b16 %v138
    %v349 = vunpack.c.l.b16 %v139
    %v350 = vunpack.c.l.b16 %v140
    %v351 = vunpack.c.h.b16 %v140
    %v352 = vunpack.c.l.b16 %v141
    %v353 = vunpack.c.l.b16 %v142
    %v354 = vunpack.c.h.b16 %v142
    %v355 = vunpack.c.l.b16 %v143
    %v356 = vunpack.c.l.b16 %v144
    %v357 = vunpack.c.h.b16 %v144
    %v358 = vunpack.c.l.b16 %v145
    %v359 = vunpack.c.l.b16 %v146
    %v360 = vunpack.c.h.b16 %v146
    %v361 = vunpack.c.l.b16 %v147
    %v362 = vunpack.c.l.b16 %v148
    %v363 = vunpack.c.h.b16 %v148
    %v364 = vunpack.c.l.b16 %v149
    %v365 = vunpack.c.l.b16 %v150
    %v366 = vunpack.c.h.b16 %v150
    %v367 = vunpack.c.l.b16 %v151
    %v368 = vunpack.c.l.b16 %v152
    %v369 = vunpack.c.h.b16 %v152
    %v370 = vunpack.c.l.b16 %v153
    %v371 = vunpack.c.l.b16 %v154
    %v372 = vunpack.c.h.b16 %v154
    %v373 = vunpack.c.l.b16 %v155
    %v374 = vunpack.c.l.b16 %v156
    %v375 = vunpack.c.h.b16 %v156
    %v376 = vunpack.c.l.b16 %v157
    %v377 = vunpack.c.l.b16 %v158
    %v378 = vunpack.c.h.b16 %v158
    %v379 = vunpack.c.l.b16 %v159
    %v380 = vunpack.c.l.b16 %v160
    %v381 = vunpack.c.h.b16 %v160
    %v382 = vunpack.c.l.b16 %v161
    %v383 = vunpack.c.l.b16 %v162
    %v384 = vunpack.c.h.b16 %v162
    %v385 = vunpack.c.l.b16 %v163
    %v386 = vunpack.c.l.b16 %v164
    %v387 = vunpack.c.h.b16 %v164
    %v388 = vunpack.c.l.b16 %v165
    %v389 = vunpack.c.l.b16 %v166
    %v390 = vunpack.c.h.b16 %v166
    %v391 = vunpack.c.l.b16 %v167
    %v392 = vunpack.c.l.b16 %v168
    %v393 = vunpack.c.h.b16 %v168
    %v394 = vunpack.c.l.b16 %v169
    %v395 = vunpack.c.l.b16 %v170
    %v396 = vunpack.c.h.b16 %v170
    %v397 = vunpack.c.l.b16 %v171
    %v398 = vunpack.c.l.b16 %v172
    %v399 = vunpack.c.h.b16 %v172
    %v400 = vunpack.c.l.b16 %v173
    %v401 = vunpack.c.l.b16 %v174
    %v402 = vunpack.c.h.b16 %v174
    %v403 = vunpack.c.l.b16 %v175
    %v404 = vunpack.c.l.b16 %v176
    %v405 = vunpack.c.h.b16 %v176
    %v406 = vunpack.c.l.b16 %v177
    %v407 = vunpack.c.l.b16 %v178
    %v408 = vunpack.c.h.b16 %v178
    %v409 = vunpack.c.l.b16 %v179
    %v410 = vunpack.c.l.b16 %v180
    %v411 = vunpack.c.h.b16 %v180
    %v412 = vunpack.c.l.b16 %v181
    %v413 = vunpack.c.l.b16 %v182
    %v414 = vunpack.c.h.b16 %v182
    %v415 = vunpack.c.l.b16 %v183
    %v416 = vunpack.c.l.b16 %v184
    %v417 = vunpack.c.h.b16 %v184
    %v418 = vunpack.c.l.b16 %v185
    %v419 = vunpack.c.l.b16 %v186
    %v420 = vunpack.c.h.b16 %v186
    %v421 = vunpack.c.l.b16 %v187
    %v422 = vunpack.c.l.b16 %v188
    %v423 = vunpack.c.h.b16 %v188
    %v424 = vunpack.c.l.b16 %v189
    %v425 = vunpack.c.l.b16 %v190
    %v426 = vunpack.c.h.b16 %v190
    %v427 = vunpack.c.l.b16 %v191
    %v428 = vunpack.c.l.b16 %v192
    %v429 = vunpack.c.h.b16 %v192
    %v430 = vunpack.c.l.b16 %v193
    %v431 = vunpack.c.l.b16 %v194
    %v432 = vunpack.c.h.b16 %v194
    %v433 = vunpack.c.l.b16 %v195
    %v434 = vunpack.c.l.b16 %v196
    %v435 = vunpack.c.h.b16 %v196
    %v436 = vunpack.c.l.b16 %v197
    %v437 = vunpack.c.l.b16 %v198
    %v438 = vunpack.c.h.b16 %v198
    %v439 = vunpack.c.l.b16 %v199
    %v440 = vunpack.c.l.b16 %v200
    %v441 = vunpack.c.h.b16 %v200
    %v442 = vunpack.c.l.b16 %v201
    %v443 = vunpack.c.l.b16 %v202
    %v444 = vunpack.c.h.b16 %v202
    %v445 = vunpack.c.l.b16 %v203
    %v446 = vunpack.c.l.b16 %v204
    %v447 = vunpack.c.h.b16 %v204
    %v448 = vunpack.c.l.b16 %v205
    %v449 = vunpack.c.l.b16 %v206
    %v450 = vunpack.c.h.b16 %v206
    %v451 = vunpack.c.l.b16 %v207
    %v452 = vunpack.c.l.b16 %v208
    %v453 = vunpack.c.h.b16 %v208
    %v454 = vunpack.c.l.b16 %v209
    %v455 = vunpack.c.l.b16 %v210
    %v456 = vunpack.c.h.b16 %v210
    %v457 = vunpack.c.l.b16 %v211
    %v458 = vunpack.c.l.b16 %v212
    %v459 = vunpack.c.h.b16 %v212
    %v460 = vunpack.c.l.b16 %v213
    %v461 = vunpack.c.l.b16 %v214
    %v462 = vunpack.c.h.b16 %v214
    %v463 = vunpack.c.l.b16 %v215
    %v464 = vunpack.c.l.b16 %v216
    %v465 = vunpack.c.h.b16 %v216
    %v466 = vunpack.c.l.b16 %v217
    %v467 = vunpack.c.l.b16 %v218
    %v468 = vunpack.c.h.b16 %v218
    %v469 = vunpack.c.l.b16 %v219
    %v470 = vunpack.c.l.b16 %v220
    %v471 = vunpack.c.h.b16 %v220
    %v472 = vunpack.c.l.b16 %v221
    %v473 = vunpack.c.l.b16 %v222
    %v474 = vunpack.c.h.b16 %v222
    %v475 = vunpack.c.l.b16 %v223
    %v476 = vunpack.c.l.b16 %v224
    %v477 = vunpack.c.h.b16 %v224
    %v478 = vunpack.c.l.b16 %v225
    %v479 = vunpack.c.l.b16 %v226
    %v480 = vunpack.c.h.b16 %v226
    %v481 = vunpack.c.l.b16 %v227
    %v482 = vunpack.c.l.b16 %v228
    %v483 = vunpack.c.h.b16 %v228
    %v484 = vunpack.c.l.b16 %v229
    %v485 = vunpack.c.l.b16 %v230
    %v486 = vunpack.c.h.b16 %v230
    %v487 = vunpack.c.l.b16 %v231
    %v488 = vunpack.c.l.b16 %v232
    %v489 = vunpack.c.h.b16 %v232
    %v490 = vunpack.c.l.b16 %v233
    %v491 = vpack.c.b16 %v350, %v347
    %v492 = vpack.c.b16 %v351, %v348
    %v493 = vpack.c.b16 %v352, %v349
    %v494 = vpack.c.b16 %v356, %v353
    %v495 = vpack.c.b16 %v357, %v354
    %v496 = vpack.c.b16 %v358, %v355
    %v497 = vpack.c.b16 %v362, %v359
    %v498 = vpack.c.b16 %v363, %v360
    %v499 = vpack.c.b16 %v364, %v361
    %v500 = vpack.c.b16 %v368, %v365
    %v501 = vpack.c.b16 %v369, %v366
    %v502 = vpack.c.b16 %v370, %v367
    %v503 = vpack.c.b16 %v374, %v371
    %v504 = vpack.c.b16 %v375, %v372
    %v505 = vpack.c.b16 %v376, %v373
    %v506 = vpack.c.b16 %v380, %v377
    %v507 = vpack.c.b16 %v381, %v378
    %v508 = vpack.c.b16 %v382, %v379
    %v509 = vpack.c.b16 %v386, %v383
    %v510 = vpack.c.b16 %v387, %v384
    %v511 = vpack.c.b16 %v388, %v385
    %v512 = vpack.c.b16 %v392, %v389
    %v513 = vpack.c.b16 %v393, %v390
    %v514 = vpack.c.b16 %v394, %v391
    %v515 = vpack.c.b16 %v398, %v395
    %v516 = vpack.c.b16 %v399, %v396
    %v517 = vpack.c.b16 %v400, %v397
    %v518 = vpack.c.b16 %v404, %v401
    %v519 = vpack.c.b16 %v405, %v402
    %v520 = vpack.c.b16 %v406, %v403
    %v521 = vpack.c.b16 %v410, %v407
    %v522 = vpack.c.b16 %v411, %v408
    %v523 = vpack.c.b16 %v412, %v409
    %v524 = vpack.c.b16 %v416, %v413
    %v525 = vpack.c.b16 %v417, %v414
    %v526 = vpack.c.b16 %v418, %v415
    %v527 = vpack.c.b16 %v422, %v419
    %v528 = vpack.c.b16 %v423, %v420
    %v529 = vpack.c.b16 %v424, %v421
    %v530 = vpack.c.b16 %v428, %v425
    %v531 = vpack.c.b16 %v429, %v426
    %v532 = vpack.c.b16 %v430, %v427
    %v533 = vpack.c.b16 %v434, %v431
    %v534 = vpack.c.b16 %v435, %v432
    %v535 = vpack.c.b16 %v436, %v433
    %v536 = vpack.c.b16 %v440, %v437
    %v537 = vpack.c.b16 %v441, %v438
    %v538 = vpack.c.b16 %v442, %v439
    %v539 = vpack.c.b16 %v446, %v443
    %v540 = vpack.c.b16 %v447, %v444
    %v541 = vpack.c.b16 %v448, %v445
    %v542 = vpack.c.b16 %v452, %v449
    %v543 = vpack.c.b16 %v453, %v450
    %v544 = vpack.c.b16 %v454, %v451
    %v545 = vpack.c.b16 %v458, %v455
    %v546 = vpack.c.b16 %v459, %v456
    %v547 = vpack.c.b16 %v460, %v457
    %v548 = vpack.c.b16 %v464, %v461
    %v549 = vpack.c.b16 %v465, %v462
    %v550 = vpack.c.b16 %v466, %v463
    %v551 = vpack.c.b16 %v470, %v467
    %v552 = vpack.c.b16 %v471, %v468
    %v553 = vpack.c.b16 %v472, %v469
    %v554 = vpack.c.b16 %v476, %v473
    %v555 = vpack.c.b16 %v477, %v474
    %v556 = vpack.c.b16 %v478, %v475
    %v557 = vpack.c.b16 %v482, %v479
    %v558 = vpack.c.b16 %v483, %v480
    %v559 = vpack.c.b16 %v484, %v481
    %v560 = vpack.c.b16 %v488, %v485
    %v561 = vpack.c.b16 %v489, %v486
    %v562 = vpack.c.b16 %v490, %v487
    %635 = vmatprep.subr.bf16.mxu0 %v492
    %636 = vmatpush1.bf16.msra.mxu0 %v491
    %637 = vmatprep.subr.bf16.mxu0 %v495
    %638 = vmatpush1.bf16.msra.mxu0 %v494
    %639 = vmatprep.subr.bf16.mxu0 %v498
    %640 = vmatpush1.bf16.msra.mxu0 %v497
    %641 = vmatprep.subr.bf16.mxu0 %v501
    %642 = vmatpush1.bf16.msra.mxu0 %v500
    %643 = vmatprep.subr.bf16.mxu0 %v504
    %644 = vmatpush1.bf16.msra.mxu0 %v503
    %645 = vmatprep.subr.bf16.mxu0 %v507
    %646 = vmatpush1.bf16.msra.mxu0 %v506
    %647 = vmatprep.subr.bf16.mxu0 %v510
    %648 = vmatpush1.bf16.msra.mxu0 %v509
    %649 = vmatprep.subr.bf16.mxu0 %v513
    %650 = vmatpush1.bf16.msra.mxu0 %v512
    %651 = vmatprep.subr.bf16.mxu0 %v516
    %652 = vmatpush1.bf16.msra.mxu0 %v515
    %653 = vmatprep.subr.bf16.mxu0 %v519
    %654 = vmatpush1.bf16.msra.mxu0 %v518
    %655 = vmatprep.subr.bf16.mxu0 %v522
    %656 = vmatpush1.bf16.msra.mxu0 %v521
    %657 = vmatprep.subr.bf16.mxu0 %v525
    %658 = vmatpush1.bf16.msra.mxu0 %v524
    %659 = vmatprep.subr.bf16.mxu0 %v528
    %660 = vmatpush1.bf16.msra.mxu0 %v527
    %661 = vmatprep.subr.bf16.mxu0 %v531
    %662 = vmatpush1.bf16.msra.mxu0 %v530
    %663 = vmatprep.subr.bf16.mxu0 %v534
    %664 = vmatpush1.bf16.msra.mxu0 %v533
    %665 = vmatprep.subr.bf16.mxu0 %v537
    %666 = vmatpush1.bf16.msra.mxu0 %v536
    %667 = vmatprep.mubr.bf16.mxu0 %v115
    %668 = vmatmul.mubr.bf16.gmra.mrb[0].mxu0 %v114
    %v669 = vpop.f32.mrb[0].mxu0
    %v670 = vadd.f32 %v239, %v669
    %v671 = vpop.f32.mrb[0].mxu0
    %v672 = vadd.f32 %v243, %v671
    %v673 = vpop.f32.mrb[0].mxu0
    %v674 = vadd.f32 %v239, %v673
    %v675 = vpop.f32.mrb[0].mxu0
    %v676 = vadd.f32 %v243, %v675
    %677 = vmatprep.mubr.bf16.mxu0 %v118
    %678 = vmatmul.mubr.bf16.gmra.mrb[0].mxu0 %v117
    %v679 = vpop.f32.mrb[0].mxu0
    %v680 = vadd.f32 %v239, %v679
    %v681 = vpop.f32.mrb[0].mxu0
    %v682 = vadd.f32 %v243, %v681
    %v683 = vpop.f32.mrb[0].mxu0
    %v684 = vadd.f32 %v239, %v683
    %v685 = vpop.f32.mrb[0].mxu0
    %v686 = vadd.f32 %v243, %v685
    %687 = vmatprep.mubr.bf16.mxu0 %v121
    %688 = vmatmul.mubr.bf16.gmra.mrb[0].mxu0 %v120
    %v689 = vpop.f32.mrb[0].mxu0
    %v690 = vadd.f32 %v239, %v689
    %v691 = vpop.f32.mrb[0].mxu0
    %v692 = vadd.f32 %v243, %v691
    %v693 = vpop.f32.mrb[0].mxu0
    %v694 = vadd.f32 %v239, %v693
    %v695 = vpop.f32.mrb[0].mxu0
    %v696 = vadd.f32 %v243, %v695
    %697 = vmatprep.mubr.bf16.mxu0 %v124
    %698 = vmatmul.mubr.bf16.gmra.mrb[0].mxu0 %v123
    %v699 = vpop.f32.mrb[0].mxu0
    %v700 = vadd.f32 %v239, %v699
    %v701 = vpop.f32.mrb[0].mxu0
    %v702 = vadd.f32 %v243, %v701
    %v703 = vpop.f32.mrb[0].mxu0
    %v704 = vadd.f32 %v239, %v703
    %v705 = vpop.f32.mrb[0].mxu0
    %v706 = vadd.f32 %v243, %v705
    %707 = vmatprep.mubr.bf16.mxu0 %v127
    %708 = vmatmul.mubr.bf16.gmra.mrb[0].mxu0 %v126
    %v709 = vpop.f32.mrb[0].mxu0
    %v710 = vadd.f32 %v239, %v709
    %v711 = vpop.f32.mrb[0].mxu0
    %v712 = vadd.f32 %v243, %v711
    %v713 = vpop.f32.mrb[0].mxu0
    %v714 = vadd.f32 %v239, %v713
    %v715 = vpop.f32.mrb[0].mxu0
    %v716 = vadd.f32 %v243, %v715
    %717 = vmatprep.mubr.bf16.mxu0 %v130
    %718 = vmatmul.mubr.bf16.gmra.mrb[0].mxu0 %v129
    %v719 = vpop.f32.mrb[0].mxu0
    %v720 = vadd.f32 %v239, %v719
    %v721 = vpop.f32.mrb[0].mxu0
    %v722 = vadd.f32 %v243, %v721
    %v723 = vpop.f32.mrb[0].mxu0
    %v724 = vadd.f32 %v239, %v723
    %v725 = vpop.f32.mrb[0].mxu0
    %v726 = vadd.f32 %v243, %v725
    %727 = vmatprep.mubr.bf16.mxu0 %v133
    %728 = vmatmul.mubr.bf16.gmra.mrb[0].mxu0 %v132
    %v729 = vpop.f32.mrb[0].mxu0
    %v730 = vadd.f32 %v239, %v729
    %v731 = vpop.f32.mrb[0].mxu0
    %v732 = vadd.f32 %v243, %v731
    %v733 = vpop.f32.mrb[0].mxu0
    %v734 = vadd.f32 %v239, %v733
    %v735 = vpop.f32.mrb[0].mxu0
    %v736 = vadd.f32 %v243, %v735
    %737 = vmatprep.mubr.bf16.mxu0 %v136
    %738 = vmatmul.mubr.bf16.gmra.mrb[0].mxu0 %v135
    %v739 = vpop.f32.mrb[0].mxu0
    %v740 = vadd.f32 %v239, %v739
    %v741 = vpop.f32.mrb[0].mxu0
    %v742 = vadd.f32 %v243, %v741
    %v743 = vpop.f32.mrb[0].mxu0
    %v744 = vadd.f32 %v239, %v743
    %v745 = vpop.f32.mrb[0].mxu0
    %v746 = vadd.f32 %v243, %v745
    %747 = vdwg.mxu0
    %748 = vmatprep.subr.bf16.mxu0 %v540
    %749 = vmatpush1.bf16.msra.mxu0 %v539
    %750 = vmatprep.subr.bf16.mxu0 %v543
    %751 = vmatpush1.bf16.msra.mxu0 %v542
    %752 = vmatprep.subr.bf16.mxu0 %v546
    %753 = vmatpush1.bf16.msra.mxu0 %v545
    %754 = vmatprep.subr.bf16.mxu0 %v549
    %755 = vmatpush1.bf16.msra.mxu0 %v548
    %756 = vmatprep.subr.bf16.mxu0 %v552
    %757 = vmatpush1.bf16.msra.mxu0 %v551
    %758 = vmatprep.subr.bf16.mxu0 %v555
    %759 = vmatpush1.bf16.msra.mxu0 %v554
    %760 = vmatprep.subr.bf16.mxu0 %v558
    %761 = vmatpush1.bf16.msra.mxu0 %v557
    %762 = vmatprep.subr.bf16.mxu0 %v561
    %763 = vmatpush1.bf16.msra.mxu0 %v560
    %764 = vmatprep.subr.bf16.mxu0 0
    %765 = vmatpush1.bf16.msra.mxu0 0
    %766 = vmatprep.subr.bf16.mxu0 0
    %767 = vmatpush1.bf16.msra.mxu0 0
    %768 = vmatprep.subr.bf16.mxu0 0
    %769 = vmatpush1.bf16.msra.mxu0 0
    %770 = vmatprep.subr.bf16.mxu0 0
    %771 = vmatpush1.bf16.msra.mxu0 0
    %772 = vmatprep.subr.bf16.mxu0 0
    %773 = vmatpush1.bf16.msra.mxu0 0
    %774 = vmatprep.subr.bf16.mxu0 0
    %775 = vmatpush1.bf16.msra.mxu0 0
    %776 = vmatprep.subr.bf16.mxu0 0
    %777 = vmatpush1.bf16.msra.mxu0 0
    %778 = vmatprep.subr.bf16.mxu0 0
    %779 = vmatpush1.bf16.msra.mxu0 0
    %780 = vmatprep.mubr.bf16.mxu0 0
    %781 = vmatmul.mubr.bf16.gmra.mrb[0].mxu0 %v116
    %v782 = vpop.f32.mrb[0].mxu0
    %v783 = vadd.f32 %v670, %v782
    %v784 = vpop.f32.mrb[0].mxu0
    %v785 = vadd.f32 %v672, %v784
    %v786 = vpop.f32.mrb[0].mxu0
    %v787 = vadd.f32 %v674, %v786
    %v788 = vpop.f32.mrb[0].mxu0
    %v789 = vadd.f32 %v676, %v788
    %790 = vmatprep.mubr.bf16.mxu0 0
    %791 = vmatmul.mubr.bf16.gmra.mrb[0].mxu0 %v119
    %v792 = vpop.f32.mrb[0].mxu0
    %v793 = vadd.f32 %v680, %v792
    %v794 = vpop.f32.mrb[0].mxu0
    %v795 = vadd.f32 %v682, %v794
    %v796 = vpop.f32.mrb[0].mxu0
    %v797 = vadd.f32 %v684, %v796
    %v798 = vpop.f32.mrb[0].mxu0
    %v799 = vadd.f32 %v686, %v798
    %800 = vmatprep.mubr.bf16.mxu0 0
    %801 = vmatmul.mubr.bf16.gmra.mrb[0].mxu0 %v122
    %v802 = vpop.f32.mrb[0].mxu0
    %v803 = vadd.f32 %v690, %v802
    %v804 = vpop.f32.mrb[0].mxu0
    %v805 = vadd.f32 %v692, %v804
    %v806 = vpop.f32.mrb[0].mxu0
    %v807 = vadd.f32 %v694, %v806
    %v808 = vpop.f32.mrb[0].mxu0
    %v809 = vadd.f32 %v696, %v808
    %810 = vmatprep.mubr.bf16.mxu0 0
    %811 = vmatmul.mubr.bf16.gmra.mrb[0].mxu0 %v125
    %v812 = vpop.f32.mrb[0].mxu0
    %v813 = vadd.f32 %v700, %v812
    %v814 = vpop.f32.mrb[0].mxu0
    %v815 = vadd.f32 %v702, %v814
    %v816 = vpop.f32.mrb[0].mxu0
    %v817 = vadd.f32 %v704, %v816
    %v818 = vpop.f32.mrb[0].mxu0
    %v819 = vadd.f32 %v706, %v818
    %820 = vmatprep.mubr.bf16.mxu0 0
    %821 = vmatmul.mubr.bf16.gmra.mrb[0].mxu0 %v128
    %v822 = vpop.f32.mrb[0].mxu0
    %v823 = vadd.f32 %v710, %v822
    %v824 = vpop.f32.mrb[0].mxu0
    %v825 = vadd.f32 %v712, %v824
    %v826 = vpop.f32.mrb[0].mxu0
    %v827 = vadd.f32 %v714, %v826
    %v828 = vpop.f32.mrb[0].mxu0
    %v829 = vadd.f32 %v716, %v828
    %830 = vmatprep.mubr.bf16.mxu0 0
    %831 = vmatmul.mubr.bf16.gmra.mrb[0].mxu0 %v131
    %v832 = vpop.f32.mrb[0].mxu0
    %v833 = vadd.f32 %v720, %v832
    %v834 = vpop.f32.mrb[0].mxu0
    %v835 = vadd.f32 %v722, %v834
    %v836 = vpop.f32.mrb[0].mxu0
    %v837 = vadd.f32 %v724, %v836
    %v838 = vpop.f32.mrb[0].mxu0
    %v839 = vadd.f32 %v726, %v838
    %840 = vmatprep.mubr.bf16.mxu0 0
    %841 = vmatmul.mubr.bf16.gmra.mrb[0].mxu0 %v134
    %v842 = vpop.f32.mrb[0].mxu0
    %v843 = vadd.f32 %v730, %v842
    %v844 = vpop.f32.mrb[0].mxu0
    %v845 = vadd.f32 %v732, %v844
    %v846 = vpop.f32.mrb[0].mxu0
    %v847 = vadd.f32 %v734, %v846
    %v848 = vpop.f32.mrb[0].mxu0
    %v849 = vadd.f32 %v736, %v848
    %850 = vmatprep.mubr.bf16.mxu0 0
    %851 = vmatmul.mubr.bf16.gmra.mrb[0].mxu0 %v137
    %v852 = vpop.f32.mrb[0].mxu0
    %v853 = vadd.f32 %v740, %v852
    %v854 = vpop.f32.mrb[0].mxu0
    %v855 = vadd.f32 %v742, %v854
    %v856 = vpop.f32.mrb[0].mxu0
    %v857 = vadd.f32 %v744, %v856
    %v858 = vpop.f32.mrb[0].mxu0
    %v859 = vadd.f32 %v746, %v858
    %860 = vdwg.mxu0
    %861 = vmatprep.subr.bf16.mxu0 0
    %862 = vmatpush1.bf16.msra.mxu0 %v493
    %863 = vmatprep.subr.bf16.mxu0 0
    %864 = vmatpush1.bf16.msra.mxu0 %v496
    %865 = vmatprep.subr.bf16.mxu0 0
    %866 = vmatpush1.bf16.msra.mxu0 %v499
    %867 = vmatprep.subr.bf16.mxu0 0
    %868 = vmatpush1.bf16.msra.mxu0 %v502
    %869 = vmatprep.subr.bf16.mxu0 0
    %870 = vmatpush1.bf16.msra.mxu0 %v505
    %871 = vmatprep.subr.bf16.mxu0 0
    %872 = vmatpush1.bf16.msra.mxu0 %v508
    %873 = vmatprep.subr.bf16.mxu0 0
    %874 = vmatpush1.bf16.msra.mxu0 %v511
    %875 = vmatprep.subr.bf16.mxu0 0
    %876 = vmatpush1.bf16.msra.mxu0 %v514
    %877 = vmatprep.subr.bf16.mxu0 0
    %878 = vmatpush1.bf16.msra.mxu0 %v517
    %879 = vmatprep.subr.bf16.mxu0 0
    %880 = vmatpush1.bf16.msra.mxu0 %v520
    %881 = vmatprep.subr.bf16.mxu0 0
    %882 = vmatpush1.bf16.msra.mxu0 %v523
    %883 = vmatprep.subr.bf16.mxu0 0
    %884 = vmatpush1.bf16.msra.mxu0 %v526
    %885 = vmatprep.subr.bf16.mxu0 0
    %886 = vmatpush1.bf16.msra.mxu0 %v529
    %887 = vmatprep.subr.bf16.mxu0 0
    %888 = vmatpush1.bf16.msra.mxu0 %v532
    %889 = vmatprep.subr.bf16.mxu0 0
    %890 = vmatpush1.bf16.msra.mxu0 %v535
    %891 = vmatprep.subr.bf16.mxu0 0
    %892 = vmatpush1.bf16.msra.mxu0 %v538
    %893 = vmatprep.mubr.bf16.mxu0 %v115
    %894 = vmatmul.mubr.bf16.gmra.mrb[0].mxu0 %v114
    %v895 = vpop.f32.mrb[0].mxu0
    %v896 = vadd.f32 %v247, %v895
    %v897 = vpop.f32.mrb[0].mxu0
    %v898 = vpop.f32.mrb[0].mxu0
    %v899 = vadd.f32 %v247, %v898
    %v900 = vpop.f32.mrb[0].mxu0
    %901 = vmatprep.mubr.bf16.mxu0 %v118
    %902 = vmatmul.mubr.bf16.gmra.mrb[0].mxu0 %v117
    %v903 = vpop.f32.mrb[0].mxu0
    %v904 = vadd.f32 %v247, %v903
    %v905 = vpop.f32.mrb[0].mxu0
    %v906 = vpop.f32.mrb[0].mxu0
    %v907 = vadd.f32 %v247, %v906
    %v908 = vpop.f32.mrb[0].mxu0
    %909 = vmatprep.mubr.bf16.mxu0 %v121
    %910 = vmatmul.mubr.bf16.gmra.mrb[0].mxu0 %v120
    %v911 = vpop.f32.mrb[0].mxu0
    %v912 = vadd.f32 %v247, %v911
    %v913 = vpop.f32.mrb[0].mxu0
    %v914 = vpop.f32.mrb[0].mxu0
    %v915 = vadd.f32 %v247, %v914
    %v916 = vpop.f32.mrb[0].mxu0
    %917 = vmatprep.mubr.bf16.mxu0 %v124
    %918 = vmatmul.mubr.bf16.gmra.mrb[0].mxu0 %v123
    %v919 = vpop.f32.mrb[0].mxu0
    %v920 = vadd.f32 %v247, %v919
    %v921 = vpop.f32.mrb[0].mxu0
    %v922 = vpop.f32.mrb[0].mxu0
    %v923 = vadd.f32 %v247, %v922
    %v924 = vpop.f32.mrb[0].mxu0
    %925 = vmatprep.mubr.bf16.mxu0 %v127
    %926 = vmatmul.mubr.bf16.gmra.mrb[0].mxu0 %v126
    %v927 = vpop.f32.mrb[0].mxu0
    %v928 = vadd.f32 %v247, %v927
    %v929 = vpop.f32.mrb[0].mxu0
    %v930 = vpop.f32.mrb[0].mxu0
    %v931 = vadd.f32 %v247, %v930
    %v932 = vpop.f32.mrb[0].mxu0
    %933 = vmatprep.mubr.bf16.mxu0 %v130
    %934 = vmatmul.mubr.bf16.gmra.mrb[0].mxu0 %v129
    %v935 = vpop.f32.mrb[0].mxu0
    %v936 = vadd.f32 %v247, %v935
    %v937 = vpop.f32.mrb[0].mxu0
    %v938 = vpop.f32.mrb[0].mxu0
    %v939 = vadd.f32 %v247, %v938
    %v940 = vpop.f32.mrb[0].mxu0
    %941 = vmatprep.mubr.bf16.mxu0 %v133
    %942 = vmatmul.mubr.bf16.gmra.mrb[0].mxu0 %v132
    %v943 = vpop.f32.mrb[0].mxu0
    %v944 = vadd.f32 %v247, %v943
    %v945 = vpop.f32.mrb[0].mxu0
    %v946 = vpop.f32.mrb[0].mxu0
    %v947 = vadd.f32 %v247, %v946
    %v948 = vpop.f32.mrb[0].mxu0
    %949 = vmatprep.mubr.bf16.mxu0 %v136
    %950 = vmatmul.mubr.bf16.gmra.mrb[0].mxu0 %v135
    %v951 = vpop.f32.mrb[0].mxu0
    %v952 = vadd.f32 %v247, %v951
    %v953 = vpop.f32.mrb[0].mxu0
    %v954 = vpop.f32.mrb[0].mxu0
    %v955 = vadd.f32 %v247, %v954
    %v956 = vpop.f32.mrb[0].mxu0
    %957 = vdwg.mxu0
    %958 = vmatprep.subr.bf16.mxu0 0
    %959 = vmatpush1.bf16.msra.mxu0 %v541
    %960 = vmatprep.subr.bf16.mxu0 0
    %961 = vmatpush1.bf16.msra.mxu0 %v544
    %962 = vmatprep.subr.bf16.mxu0 0
    %963 = vmatpush1.bf16.msra.mxu0 %v547
    %964 = vmatprep.subr.bf16.mxu0 0
    %965 = vmatpush1.bf16.msra.mxu0 %v550
    %966 = vmatprep.subr.bf16.mxu0 0
    %967 = vmatpush1.bf16.msra.mxu0 %v553
    %968 = vmatprep.subr.bf16.mxu0 0
    %969 = vmatpush1.bf16.msra.mxu0 %v556
    %970 = vmatprep.subr.bf16.mxu0 0
    %971 = vmatpush1.bf16.msra.mxu0 %v559
    %972 = vmatprep.subr.bf16.mxu0 0
    %973 = vmatpush1.bf16.msra.mxu0 %v562
    %974 = vmatprep.subr.bf16.mxu0 0
    %975 = vmatpush1.bf16.msra.mxu0 0
    %976 = vmatprep.subr.bf16.mxu0 0
    %977 = vmatpush1.bf16.msra.mxu0 0
    %978 = vmatprep.subr.bf16.mxu0 0
    %979 = vmatpush1.bf16.msra.mxu0 0
    %980 = vmatprep.subr.bf16.mxu0 0
    %981 = vmatpush1.bf16.msra.mxu0 0
    %982 = vmatprep.subr.bf16.mxu0 0
    %983 = vmatpush1.bf16.msra.mxu0 0
    %984 = vmatprep.subr.bf16.mxu0 0
    %985 = vmatpush1.bf16.msra.mxu0 0
    %986 = vmatprep.subr.bf16.mxu0 0
    %987 = vmatpush1.bf16.msra.mxu0 0
    %988 = vmatprep.subr.bf16.mxu0 0
    %989 = vmatpush1.bf16.msra.mxu0 0
    %990 = vmatprep.mubr.bf16.mxu0 0
    %991 = vmatmul.mubr.bf16.gmra.mrb[0].mxu0 %v116
    %v992 = vpop.f32.mrb[0].mxu0
    %v993 = vadd.f32 %v896, %v992
    %v994 = vpop.f32.mrb[0].mxu0
    %v995 = vpop.f32.mrb[0].mxu0
    %v996 = vadd.f32 %v899, %v995
    %v997 = vpop.f32.mrb[0].mxu0
    %998 = vmatprep.mubr.bf16.mxu0 0
    %999 = vmatmul.mubr.bf16.gmra.mrb[0].mxu0 %v119
    %v1000 = vpop.f32.mrb[0].mxu0
    %v1001 = vadd.f32 %v904, %v1000
    %v1002 = vpop.f32.mrb[0].mxu0
    %v1003 = vpop.f32.mrb[0].mxu0
    %v1004 = vadd.f32 %v907, %v1003
    %v1005 = vpop.f32.mrb[0].mxu0
    %1006 = vmatprep.mubr.bf16.mxu0 0
    %1007 = vmatmul.mubr.bf16.gmra.mrb[0].mxu0 %v122
    %v1008 = vpop.f32.mrb[0].mxu0
    %v1009 = vadd.f32 %v912, %v1008
    %v1010 = vpop.f32.mrb[0].mxu0
    %v1011 = vpop.f32.mrb[0].mxu0
    %v1012 = vadd.f32 %v915, %v1011
    %v1013 = vpop.f32.mrb[0].mxu0
    %1014 = vmatprep.mubr.bf16.mxu0 0
    %1015 = vmatmul.mubr.bf16.gmra.mrb[0].mxu0 %v125
    %v1016 = vpop.f32.mrb[0].mxu0
    %v1017 = vadd.f32 %v920, %v1016
    %v1018 = vpop.f32.mrb[0].mxu0
    %v1019 = vpop.f32.mrb[0].mxu0
    %v1020 = vadd.f32 %v923, %v1019
    %v1021 = vpop.f32.mrb[0].mxu0
    %1022 = vmatprep.mubr.bf16.mxu0 0
    %1023 = vmatmul.mubr.bf16.gmra.mrb[0].mxu0 %v128
    %v1024 = vpop.f32.mrb[0].mxu0
    %v1025 = vadd.f32 %v928, %v1024
    %v1026 = vpop.f32.mrb[0].mxu0
    %v1027 = vpop.f32.mrb[0].mxu0
    %v1028 = vadd.f32 %v931, %v1027
    %v1029 = vpop.f32.mrb[0].mxu0
    %1030 = vmatprep.mubr.bf16.mxu0 0
    %1031 = vmatmul.mubr.bf16.gmra.mrb[0].mxu0 %v131
    %v1032 = vpop.f32.mrb[0].mxu0
    %v1033 = vadd.f32 %v936, %v1032
    %v1034 = vpop.f32.mrb[0].mxu0
    %v1035 = vpop.f32.mrb[0].mxu0
    %v1036 = vadd.f32 %v939, %v1035
    %v1037 = vpop.f32.mrb[0].mxu0
    %1038 = vmatprep.mubr.bf16.mxu0 0
    %1039 = vmatmul.mubr.bf16.gmra.mrb[0].mxu0 %v134
    %v1040 = vpop.f32.mrb[0].mxu0
    %v1041 = vadd.f32 %v944, %v1040
    %v1042 = vpop.f32.mrb[0].mxu0
    %v1043 = vpop.f32.mrb[0].mxu0
    %v1044 = vadd.f32 %v947, %v1043
    %v1045 = vpop.f32.mrb[0].mxu0
    %1046 = vmatprep.mubr.bf16.mxu0 0
    %1047 = vmatmul.mubr.bf16.gmra.mrb[0].mxu0 %v137
    %v1048 = vpop.f32.mrb[0].mxu0
    %v1049 = vadd.f32 %v952, %v1048
    %v1050 = vpop.f32.mrb[0].mxu0
    %v1051 = vpop.f32.mrb[0].mxu0
    %v1052 = vadd.f32 %v955, %v1051
    %v1053 = vpop.f32.mrb[0].mxu0
    %1054 = vdwg.mxu0
    %v1055 = vld [vmem:[#allocation7] sm:$0xff]
    %v1056 = vld [vmem:[#allocation7 + $0x8] sm:$0xf]
    %v1057 = vld [vmem:[#allocation7 + $0xc] sm:$0xff]
    %v1058 = vld [vmem:[#allocation7 + $0x14] sm:$0xf]
    %v1059 = vld [vmem:[#allocation7 + $0x18] sm:$0xff]
    %v1060 = vld [vmem:[#allocation7 + $0x20] sm:$0xf]
    %v1061 = vld [vmem:[#allocation7 + $0x24] sm:$0xff]
    %v1062 = vld [vmem:[#allocation7 + $0x2c] sm:$0xf]
    %v1063 = vld [vmem:[#allocation7 + $0x30] sm:$0xff]
    %v1064 = vld [vmem:[#allocation7 + $0x38] sm:$0xf]
    %v1065 = vld [vmem:[#allocation7 + $0x3c] sm:$0xff]
    %v1066 = vld [vmem:[#allocation7 + $0x44] sm:$0xf]
    %v1067 = vld [vmem:[#allocation7 + $0x48] sm:$0xff]
    %v1068 = vld [vmem:[#allocation7 + $0x50] sm:$0xf]
    %v1069 = vld [vmem:[#allocation7 + $0x54] sm:$0xff]
    %v1070 = vld [vmem:[#allocation7 + $0x5c] sm:$0xf]
    %v1071 = vld [vmem:[#allocation7 + $0x60] sm:$0xff]
    %v1072 = vld [vmem:[#allocation7 + $0x68] sm:$0xf]
    %v1073 = vld [vmem:[#allocation7 + $0x6c] sm:$0xff]
    %v1074 = vld [vmem:[#allocation7 + $0x74] sm:$0xf]
    %v1075 = vld [vmem:[#allocation7 + $0x78] sm:$0xff]
    %v1076 = vld [vmem:[#allocation7 + $0x80] sm:$0xf]
    %v1077 = vld [vmem:[#allocation7 + $0x84] sm:$0xff]
    %v1078 = vld [vmem:[#allocation7 + $0x8c] sm:$0xf]
    %v1079 = vld [vmem:[#allocation7 + $0x90] sm:$0xff]
    %v1080 = vld [vmem:[#allocation7 + $0x98] sm:$0xf]
    %v1081 = vld [vmem:[#allocation7 + $0x9c] sm:$0xff]
    %v1082 = vld [vmem:[#allocation7 + $0xa4] sm:$0xf]
    %v1083 = vld [vmem:[#allocation7 + $0xa8] sm:$0xff]
    %v1084 = vld [vmem:[#allocation7 + $0xb0] sm:$0xf]
    %v1085 = vld [vmem:[#allocation7 + $0xb4] sm:$0xff]
    %v1086 = vld [vmem:[#allocation7 + $0xbc] sm:$0xf]
    %v1087 = vld [vmem:[#allocation7 + $0xc0] sm:$0xff]
    %v1088 = vld [vmem:[#allocation7 + $0xc8] sm:$0xf]
    %v1089 = vld [vmem:[#allocation7 + $0xcc] sm:$0xff]
    %v1090 = vld [vmem:[#allocation7 + $0xd4] sm:$0xf]
    %v1091 = vld [vmem:[#allocation7 + $0xd8] sm:$0xff]
    %v1092 = vld [vmem:[#allocation7 + $0xe0] sm:$0xf]
    %v1093 = vld [vmem:[#allocation7 + $0xe4] sm:$0xff]
    %v1094 = vld [vmem:[#allocation7 + $0xec] sm:$0xf]
    %v1095 = vld [vmem:[#allocation7 + $0xf0] sm:$0xff]
    %v1096 = vld [vmem:[#allocation7 + $0xf8] sm:$0xf]
    %v1097 = vld [vmem:[#allocation7 + $0xfc] sm:$0xff]
    %v1098 = vld [vmem:[#allocation7 + $0x104] sm:$0xf]
    %v1099 = vld [vmem:[#allocation7 + $0x108] sm:$0xff]
    %v1100 = vld [vmem:[#allocation7 + $0x110] sm:$0xf]
    %v1101 = vld [vmem:[#allocation7 + $0x114] sm:$0xff]
    %v1102 = vld [vmem:[#allocation7 + $0x11c] sm:$0xf]
    %v1103 = vld [vmem:[#allocation7 + $0x120] sm:$0xff]
    %v1104 = vld [vmem:[#allocation7 + $0x128] sm:$0xf]
    %v1105 = vld [vmem:[#allocation7 + $0x12c] sm:$0xff]
    %v1106 = vld [vmem:[#allocation7 + $0x134] sm:$0xf]
    %v1107 = vld [vmem:[#allocation7 + $0x138] sm:$0xff]
    %v1108 = vld [vmem:[#allocation7 + $0x140] sm:$0xf]
    %v1109 = vld [vmem:[#allocation7 + $0x144] sm:$0xff]
    %v1110 = vld [vmem:[#allocation7 + $0x14c] sm:$0xf]
    %v1111 = vld [vmem:[#allocation7 + $0x150] sm:$0xff]
    %v1112 = vld [vmem:[#allocation7 + $0x158] sm:$0xf]
    %v1113 = vld [vmem:[#allocation7 + $0x15c] sm:$0xff]
    %v1114 = vld [vmem:[#allocation7 + $0x164] sm:$0xf]
    %v1115 = vld [vmem:[#allocation7 + $0x168] sm:$0xff]
    %v1116 = vld [vmem:[#allocation7 + $0x170] sm:$0xf]
    %v1117 = vld [vmem:[#allocation7 + $0x174] sm:$0xff]
    %v1118 = vld [vmem:[#allocation7 + $0x17c] sm:$0xf]
    %v1119 = vld [vmem:[#allocation7 + $0x180] sm:$0xff]
    %v1120 = vld [vmem:[#allocation7 + $0x188] sm:$0xf]
    %v1121 = vld [vmem:[#allocation7 + $0x18c] sm:$0xff]
    %v1122 = vld [vmem:[#allocation7 + $0x194] sm:$0xf]
    %v1123 = vld [vmem:[#allocation7 + $0x198] sm:$0xff]
    %v1124 = vld [vmem:[#allocation7 + $0x1a0] sm:$0xf]
    %v1125 = vld [vmem:[#allocation7 + $0x1a4] sm:$0xff]
    %v1126 = vld [vmem:[#allocation7 + $0x1ac] sm:$0xf]
    %v1127 = vld [vmem:[#allocation7 + $0x1b0] sm:$0xff]
    %v1128 = vld [vmem:[#allocation7 + $0x1b8] sm:$0xf]
    %v1129 = vld [vmem:[#allocation7 + $0x1bc] sm:$0xff]
    %v1130 = vld [vmem:[#allocation7 + $0x1c4] sm:$0xf]
    %v1131 = vld [vmem:[#allocation7 + $0x1c8] sm:$0xff]
    %v1132 = vld [vmem:[#allocation7 + $0x1d0] sm:$0xf]
    %v1133 = vld [vmem:[#allocation7 + $0x1d4] sm:$0xff]
    %v1134 = vld [vmem:[#allocation7 + $0x1dc] sm:$0xf]
    %v1135 = vld [vmem:[#allocation7 + $0x1e0] sm:$0xff]
    %v1136 = vld [vmem:[#allocation7 + $0x1e8] sm:$0xf]
    %v1137 = vld [vmem:[#allocation7 + $0x1ec] sm:$0xff]
    %v1138 = vld [vmem:[#allocation7 + $0x1f4] sm:$0xf]
    %v1139 = vld [vmem:[#allocation7 + $0x1f8] sm:$0xff]
    %v1140 = vld [vmem:[#allocation7 + $0x200] sm:$0xf]
    %v1141 = vld [vmem:[#allocation7 + $0x204] sm:$0xff]
    %v1142 = vld [vmem:[#allocation7 + $0x20c] sm:$0xf]
    %v1143 = vld [vmem:[#allocation7 + $0x210] sm:$0xff]
    %v1144 = vld [vmem:[#allocation7 + $0x218] sm:$0xf]
    %v1145 = vld [vmem:[#allocation7 + $0x21c] sm:$0xff]
    %v1146 = vld [vmem:[#allocation7 + $0x224] sm:$0xf]
    %v1147 = vld [vmem:[#allocation7 + $0x228] sm:$0xff]
    %v1148 = vld [vmem:[#allocation7 + $0x230] sm:$0xf]
    %v1149 = vld [vmem:[#allocation7 + $0x234] sm:$0xff]
    %v1150 = vld [vmem:[#allocation7 + $0x23c] sm:$0xf]
    %v1151 = vld [vmem:[%s4] sm:$0x7]
    %v1153 = vlaneseq
    %v1154 = vshrl.u32 %v1153, 7
    %v1155 = vsub.s32 0, %v1154
    %v1156 = vrot.slane %v1151, %v1155
    %v1157 = vlaneseq
    %v1158 = vshrl.u32 %v1157, 7
    %v1159 = vsub.s32 1, %v1158
    %v1160 = vrot.slane %v1151, %v1159
    %v1161 = vlaneseq
    %v1162 = vshrl.u32 %v1161, 7
    %v1163 = vsub.s32 2, %v1162
    %v1164 = vrot.slane %v1151, %v1163
    %v1264 = vunpack.c.l.b16 %v1055
    %v1265 = vunpack.c.h.b16 %v1055
    %v1266 = vunpack.c.l.b16 %v1056
    %v1267 = vunpack.c.l.b16 %v1057
    %v1268 = vunpack.c.h.b16 %v1057
    %v1269 = vunpack.c.l.b16 %v1058
    %v1270 = vunpack.c.l.b16 %v1059
    %v1271 = vunpack.c.h.b16 %v1059
    %v1272 = vunpack.c.l.b16 %v1060
    %v1273 = vunpack.c.l.b16 %v1061
    %v1274 = vunpack.c.h.b16 %v1061
    %v1275 = vunpack.c.l.b16 %v1062
    %v1276 = vunpack.c.l.b16 %v1063
    %v1277 = vunpack.c.h.b16 %v1063
    %v1278 = vunpack.c.l.b16 %v1064
    %v1279 = vunpack.c.l.b16 %v1065
    %v1280 = vunpack.c.h.b16 %v1065
    %v1281 = vunpack.c.l.b16 %v1066
    %v1282 = vunpack.c.l.b16 %v1067
    %v1283 = vunpack.c.h.b16 %v1067
    %v1284 = vunpack.c.l.b16 %v1068
    %v1285 = vunpack.c.l.b16 %v1069
    %v1286 = vunpack.c.h.b16 %v1069
    %v1287 = vunpack.c.l.b16 %v1070
    %v1288 = vunpack.c.l.b16 %v1071
    %v1289 = vunpack.c.h.b16 %v1071
    %v1290 = vunpack.c.l.b16 %v1072
    %v1291 = vunpack.c.l.b16 %v1073
    %v1292 = vunpack.c.h.b16 %v1073
    %v1293 = vunpack.c.l.b16 %v1074
    %v1294 = vunpack.c.l.b16 %v1075
    %v1295 = vunpack.c.h.b16 %v1075
    %v1296 = vunpack.c.l.b16 %v1076
    %v1297 = vunpack.c.l.b16 %v1077
    %v1298 = vunpack.c.h.b16 %v1077
    %v1299 = vunpack.c.l.b16 %v1078
    %v1300 = vunpack.c.l.b16 %v1079
    %v1301 = vunpack.c.h.b16 %v1079
    %v1302 = vunpack.c.l.b16 %v1080
    %v1303 = vunpack.c.l.b16 %v1081
    %v1304 = vunpack.c.h.b16 %v1081
    %v1305 = vunpack.c.l.b16 %v1082
    %v1306 = vunpack.c.l.b16 %v1083
    %v1307 = vunpack.c.h.b16 %v1083
    %v1308 = vunpack.c.l.b16 %v1084
    %v1309 = vunpack.c.l.b16 %v1085
    %v1310 = vunpack.c.h.b16 %v1085
    %v1311 = vunpack.c.l.b16 %v1086
    %v1312 = vunpack.c.l.b16 %v1087
    %v1313 = vunpack.c.h.b16 %v1087
    %v1314 = vunpack.c.l.b16 %v1088
    %v1315 = vunpack.c.l.b16 %v1089
    %v1316 = vunpack.c.h.b16 %v1089
    %v1317 = vunpack.c.l.b16 %v1090
    %v1318 = vunpack.c.l.b16 %v1091
    %v1319 = vunpack.c.h.b16 %v1091
    %v1320 = vunpack.c.l.b16 %v1092
    %v1321 = vunpack.c.l.b16 %v1093
    %v1322 = vunpack.c.h.b16 %v1093
    %v1323 = vunpack.c.l.b16 %v1094
    %v1324 = vunpack.c.l.b16 %v1095
    %v1325 = vunpack.c.h.b16 %v1095
    %v1326 = vunpack.c.l.b16 %v1096
    %v1327 = vunpack.c.l.b16 %v1097
    %v1328 = vunpack.c.h.b16 %v1097
    %v1329 = vunpack.c.l.b16 %v1098
    %v1330 = vunpack.c.l.b16 %v1099
    %v1331 = vunpack.c.h.b16 %v1099
    %v1332 = vunpack.c.l.b16 %v1100
    %v1333 = vunpack.c.l.b16 %v1101
    %v1334 = vunpack.c.h.b16 %v1101
    %v1335 = vunpack.c.l.b16 %v1102
    %v1336 = vunpack.c.l.b16 %v1103
    %v1337 = vunpack.c.h.b16 %v1103
    %v1338 = vunpack.c.l.b16 %v1104
    %v1339 = vunpack.c.l.b16 %v1105
    %v1340 = vunpack.c.h.b16 %v1105
    %v1341 = vunpack.c.l.b16 %v1106
    %v1342 = vunpack.c.l.b16 %v1107
    %v1343 = vunpack.c.h.b16 %v1107
    %v1344 = vunpack.c.l.b16 %v1108
    %v1345 = vunpack.c.l.b16 %v1109
    %v1346 = vunpack.c.h.b16 %v1109
    %v1347 = vunpack.c.l.b16 %v1110
    %v1348 = vunpack.c.l.b16 %v1111
    %v1349 = vunpack.c.h.b16 %v1111
    %v1350 = vunpack.c.l.b16 %v1112
    %v1351 = vunpack.c.l.b16 %v1113
    %v1352 = vunpack.c.h.b16 %v1113
    %v1353 = vunpack.c.l.b16 %v1114
    %v1354 = vunpack.c.l.b16 %v1115
    %v1355 = vunpack.c.h.b16 %v1115
    %v1356 = vunpack.c.l.b16 %v1116
    %v1357 = vunpack.c.l.b16 %v1117
    %v1358 = vunpack.c.h.b16 %v1117
    %v1359 = vunpack.c.l.b16 %v1118
    %v1360 = vunpack.c.l.b16 %v1119
    %v1361 = vunpack.c.h.b16 %v1119
    %v1362 = vunpack.c.l.b16 %v1120
    %v1363 = vunpack.c.l.b16 %v1121
    %v1364 = vunpack.c.h.b16 %v1121
    %v1365 = vunpack.c.l.b16 %v1122
    %v1366 = vunpack.c.l.b16 %v1123
    %v1367 = vunpack.c.h.b16 %v1123
    %v1368 = vunpack.c.l.b16 %v1124
    %v1369 = vunpack.c.l.b16 %v1125
    %v1370 = vunpack.c.h.b16 %v1125
    %v1371 = vunpack.c.l.b16 %v1126
    %v1372 = vunpack.c.l.b16 %v1127
    %v1373 = vunpack.c.h.b16 %v1127
    %v1374 = vunpack.c.l.b16 %v1128
    %v1375 = vunpack.c.l.b16 %v1129
    %v1376 = vunpack.c.h.b16 %v1129
    %v1377 = vunpack.c.l.b16 %v1130
    %v1378 = vunpack.c.l.b16 %v1131
    %v1379 = vunpack.c.h.b16 %v1131
    %v1380 = vunpack.c.l.b16 %v1132
    %v1381 = vunpack.c.l.b16 %v1133
    %v1382 = vunpack.c.h.b16 %v1133
    %v1383 = vunpack.c.l.b16 %v1134
    %v1384 = vunpack.c.l.b16 %v1135
    %v1385 = vunpack.c.h.b16 %v1135
    %v1386 = vunpack.c.l.b16 %v1136
    %v1387 = vunpack.c.l.b16 %v1137
    %v1388 = vunpack.c.h.b16 %v1137
    %v1389 = vunpack.c.l.b16 %v1138
    %v1390 = vunpack.c.l.b16 %v1139
    %v1391 = vunpack.c.h.b16 %v1139
    %v1392 = vunpack.c.l.b16 %v1140
    %v1393 = vunpack.c.l.b16 %v1141
    %v1394 = vunpack.c.h.b16 %v1141
    %v1395 = vunpack.c.l.b16 %v1142
    %v1396 = vunpack.c.l.b16 %v1143
    %v1397 = vunpack.c.h.b16 %v1143
    %v1398 = vunpack.c.l.b16 %v1144
    %v1399 = vunpack.c.l.b16 %v1145
    %v1400 = vunpack.c.h.b16 %v1145
    %v1401 = vunpack.c.l.b16 %v1146
    %v1402 = vunpack.c.l.b16 %v1147
    %v1403 = vunpack.c.h.b16 %v1147
    %v1404 = vunpack.c.l.b16 %v1148
    %v1405 = vunpack.c.l.b16 %v1149
    %v1406 = vunpack.c.h.b16 %v1149
    %v1407 = vunpack.c.l.b16 %v1150
    %v1408 = vpack.c.b16 %v1267, %v1264
    %v1409 = vpack.c.b16 %v1268, %v1265
    %v1410 = vpack.c.b16 %v1269, %v1266
    %v1411 = vpack.c.b16 %v1273, %v1270
    %v1412 = vpack.c.b16 %v1274, %v1271
    %v1413 = vpack.c.b16 %v1275, %v1272
    %v1414 = vpack.c.b16 %v1279, %v1276
    %v1415 = vpack.c.b16 %v1280, %v1277
    %v1416 = vpack.c.b16 %v1281, %v1278
    %v1417 = vpack.c.b16 %v1285, %v1282
    %v1418 = vpack.c.b16 %v1286, %v1283
    %v1419 = vpack.c.b16 %v1287, %v1284
    %v1420 = vpack.c.b16 %v1291, %v1288
    %v1421 = vpack.c.b16 %v1292, %v1289
    %v1422 = vpack.c.b16 %v1293, %v1290
    %v1423 = vpack.c.b16 %v1297, %v1294
    %v1424 = vpack.c.b16 %v1298, %v1295
    %v1425 = vpack.c.b16 %v1299, %v1296
    %v1426 = vpack.c.b16 %v1303, %v1300
    %v1427 = vpack.c.b16 %v1304, %v1301
    %v1428 = vpack.c.b16 %v1305, %v1302
    %v1429 = vpack.c.b16 %v1309, %v1306
    %v1430 = vpack.c.b16 %v1310, %v1307
    %v1431 = vpack.c.b16 %v1311, %v1308
    %v1432 = vpack.c.b16 %v1315, %v1312
    %v1433 = vpack.c.b16 %v1316, %v1313
    %v1434 = vpack.c.b16 %v1317, %v1314
    %v1435 = vpack.c.b16 %v1321, %v1318
    %v1436 = vpack.c.b16 %v1322, %v1319
    %v1437 = vpack.c.b16 %v1323, %v1320
    %v1438 = vpack.c.b16 %v1327, %v1324
    %v1439 = vpack.c.b16 %v1328, %v1325
    %v1440 = vpack.c.b16 %v1329, %v1326
    %v1441 = vpack.c.b16 %v1333, %v1330
    %v1442 = vpack.c.b16 %v1334, %v1331
    %v1443 = vpack.c.b16 %v1335, %v1332
    %v1444 = vpack.c.b16 %v1339, %v1336
    %v1445 = vpack.c.b16 %v1340, %v1337
    %v1446 = vpack.c.b16 %v1341, %v1338
    %v1447 = vpack.c.b16 %v1345, %v1342
    %v1448 = vpack.c.b16 %v1346, %v1343
    %v1449 = vpack.c.b16 %v1347, %v1344
    %v1450 = vpack.c.b16 %v1351, %v1348
    %v1451 = vpack.c.b16 %v1352, %v1349
    %v1452 = vpack.c.b16 %v1353, %v1350
    %v1453 = vpack.c.b16 %v1357, %v1354
    %v1454 = vpack.c.b16 %v1358, %v1355
    %v1455 = vpack.c.b16 %v1359, %v1356
    %v1456 = vpack.c.b16 %v1363, %v1360
    %v1457 = vpack.c.b16 %v1364, %v1361
    %v1458 = vpack.c.b16 %v1365, %v1362
    %v1459 = vpack.c.b16 %v1369, %v1366
    %v1460 = vpack.c.b16 %v1370, %v1367
    %v1461 = vpack.c.b16 %v1371, %v1368
    %v1462 = vpack.c.b16 %v1375, %v1372
    %v1463 = vpack.c.b16 %v1376, %v1373
    %v1464 = vpack.c.b16 %v1377, %v1374
    %v1465 = vpack.c.b16 %v1381, %v1378
    %v1466 = vpack.c.b16 %v1382, %v1379
    %v1467 = vpack.c.b16 %v1383, %v1380
    %v1468 = vpack.c.b16 %v1387, %v1384
    %v1469 = vpack.c.b16 %v1388, %v1385
    %v1470 = vpack.c.b16 %v1389, %v1386
    %v1471 = vpack.c.b16 %v1393, %v1390
    %v1472 = vpack.c.b16 %v1394, %v1391
    %v1473 = vpack.c.b16 %v1395, %v1392
    %v1474 = vpack.c.b16 %v1399, %v1396
    %v1475 = vpack.c.b16 %v1400, %v1397
    %v1476 = vpack.c.b16 %v1401, %v1398
    %v1477 = vpack.c.b16 %v1405, %v1402
    %v1478 = vpack.c.b16 %v1406, %v1403
    %v1479 = vpack.c.b16 %v1407, %v1404
    %1552 = vmatprep.subr.bf16.mxu0 %v1409
    %1553 = vmatpush1.bf16.msra.mxu0 %v1408
    %1554 = vmatprep.subr.bf16.mxu0 %v1412
    %1555 = vmatpush1.bf16.msra.mxu0 %v1411
    %1556 = vmatprep.subr.bf16.mxu0 %v1415
    %1557 = vmatpush1.bf16.msra.mxu0 %v1414
    %1558 = vmatprep.subr.bf16.mxu0 %v1418
    %1559 = vmatpush1.bf16.msra.mxu0 %v1417
    %1560 = vmatprep.subr.bf16.mxu0 %v1421
    %1561 = vmatpush1.bf16.msra.mxu0 %v1420
    %1562 = vmatprep.subr.bf16.mxu0 %v1424
    %1563 = vmatpush1.bf16.msra.mxu0 %v1423
    %1564 = vmatprep.subr.bf16.mxu0 %v1427
    %1565 = vmatpush1.bf16.msra.mxu0 %v1426
    %1566 = vmatprep.subr.bf16.mxu0 %v1430
    %1567 = vmatpush1.bf16.msra.mxu0 %v1429
    %1568 = vmatprep.subr.bf16.mxu0 %v1433
    %1569 = vmatpush1.bf16.msra.mxu0 %v1432
    %1570 = vmatprep.subr.bf16.mxu0 %v1436
    %1571 = vmatpush1.bf16.msra.mxu0 %v1435
    %1572 = vmatprep.subr.bf16.mxu0 %v1439
    %1573 = vmatpush1.bf16.msra.mxu0 %v1438
    %1574 = vmatprep.subr.bf16.mxu0 %v1442
    %1575 = vmatpush1.bf16.msra.mxu0 %v1441
    %1576 = vmatprep.subr.bf16.mxu0 %v1445
    %1577 = vmatpush1.bf16.msra.mxu0 %v1444
    %1578 = vmatprep.subr.bf16.mxu0 %v1448
    %1579 = vmatpush1.bf16.msra.mxu0 %v1447
    %1580 = vmatprep.subr.bf16.mxu0 %v1451
    %1581 = vmatpush1.bf16.msra.mxu0 %v1450
    %1582 = vmatprep.subr.bf16.mxu0 %v1454
    %1583 = vmatpush1.bf16.msra.mxu0 %v1453
    %1584 = vmatprep.mubr.bf16.mxu0 %v115
    %1585 = vmatmul.mubr.bf16.gmra.mrb[0].mxu0 %v114
    %v1586 = vpop.f32.mrb[0].mxu0
    %v1587 = vadd.f32 %v1156, %v1586
    %v1588 = vpop.f32.mrb[0].mxu0
    %v1589 = vadd.f32 %v1160, %v1588
    %v1590 = vpop.f32.mrb[0].mxu0
    %v1591 = vadd.f32 %v1156, %v1590
    %v1592 = vpop.f32.mrb[0].mxu0
    %v1593 = vadd.f32 %v1160, %v1592
    %1594 = vmatprep.mubr.bf16.mxu0 %v118
    %1595 = vmatmul.mubr.bf16.gmra.mrb[0].mxu0 %v117
    %v1596 = vpop.f32.mrb[0].mxu0
    %v1597 = vadd.f32 %v1156, %v1596
    %v1598 = vpop.f32.mrb[0].mxu0
    %v1599 = vadd.f32 %v1160, %v1598
    %v1600 = vpop.f32.mrb[0].mxu0
    %v1601 = vadd.f32 %v1156, %v1600
    %v1602 = vpop.f32.mrb[0].mxu0
    %v1603 = vadd.f32 %v1160, %v1602
    %1604 = vmatprep.mubr.bf16.mxu0 %v121
    %1605 = vmatmul.mubr.bf16.gmra.mrb[0].mxu0 %v120
    %v1606 = vpop.f32.mrb[0].mxu0
    %v1607 = vadd.f32 %v1156, %v1606
    %v1608 = vpop.f32.mrb[0].mxu0
    %v1609 = vadd.f32 %v1160, %v1608
    %v1610 = vpop.f32.mrb[0].mxu0
    %v1611 = vadd.f32 %v1156, %v1610
    %v1612 = vpop.f32.mrb[0].mxu0
    %v1613 = vadd.f32 %v1160, %v1612
    %1614 = vmatprep.mubr.bf16.mxu0 %v124
    %1615 = vmatmul.mubr.bf16.gmra.mrb[0].mxu0 %v123
    %v1616 = vpop.f32.mrb[0].mxu0
    %v1617 = vadd.f32 %v1156, %v1616
    %v1618 = vpop.f32.mrb[0].mxu0
    %v1619 = vadd.f32 %v1160, %v1618
    %v1620 = vpop.f32.mrb[0].mxu0
    %v1621 = vadd.f32 %v1156, %v1620
    %v1622 = vpop.f32.mrb[0].mxu0
    %v1623 = vadd.f32 %v1160, %v1622
    %1624 = vmatprep.mubr.bf16.mxu0 %v127
    %1625 = vmatmul.mubr.bf16.gmra.mrb[0].mxu0 %v126
    %v1626 = vpop.f32.mrb[0].mxu0
    %v1627 = vadd.f32 %v1156, %v1626
    %v1628 = vpop.f32.mrb[0].mxu0
    %v1629 = vadd.f32 %v1160, %v1628
    %v1630 = vpop.f32.mrb[0].mxu0
    %v1631 = vadd.f32 %v1156, %v1630
    %v1632 = vpop.f32.mrb[0].mxu0
    %v1633 = vadd.f32 %v1160, %v1632
    %1634 = vmatprep.mubr.bf16.mxu0 %v130
    %1635 = vmatmul.mubr.bf16.gmra.mrb[0].mxu0 %v129
    %v1636 = vpop.f32.mrb[0].mxu0
    %v1637 = vadd.f32 %v1156, %v1636
    %v1638 = vpop.f32.mrb[0].mxu0
    %v1639 = vadd.f32 %v1160, %v1638
    %v1640 = vpop.f32.mrb[0].mxu0
    %v1641 = vadd.f32 %v1156, %v1640
    %v1642 = vpop.f32.mrb[0].mxu0
    %v1643 = vadd.f32 %v1160, %v1642
    %1644 = vmatprep.mubr.bf16.mxu0 %v133
    %1645 = vmatmul.mubr.bf16.gmra.mrb[0].mxu0 %v132
    %v1646 = vpop.f32.mrb[0].mxu0
    %v1647 = vadd.f32 %v1156, %v1646
    %v1648 = vpop.f32.mrb[0].mxu0
    %v1649 = vadd.f32 %v1160, %v1648
    %v1650 = vpop.f32.mrb[0].mxu0
    %v1651 = vadd.f32 %v1156, %v1650
    %v1652 = vpop.f32.mrb[0].mxu0
    %v1653 = vadd.f32 %v1160, %v1652
    %1654 = vmatprep.mubr.bf16.mxu0 %v136
    %1655 = vmatmul.mubr.bf16.gmra.mrb[0].mxu0 %v135
    %v1656 = vpop.f32.mrb[0].mxu0
    %v1657 = vadd.f32 %v1156, %v1656
    %v1658 = vpop.f32.mrb[0].mxu0
    %v1659 = vadd.f32 %v1160, %v1658
    %v1660 = vpop.f32.mrb[0].mxu0
    %v1661 = vadd.f32 %v1156, %v1660
    %v1662 = vpop.f32.mrb[0].mxu0
    %v1663 = vadd.f32 %v1160, %v1662
    %1664 = vdwg.mxu0
    %1665 = vmatprep.subr.bf16.mxu0 %v1457
    %1666 = vmatpush1.bf16.msra.mxu0 %v1456
    %1667 = vmatprep.subr.bf16.mxu0 %v1460
    %1668 = vmatpush1.bf16.msra.mxu0 %v1459
    %1669 = vmatprep.subr.bf16.mxu0 %v1463
    %1670 = vmatpush1.bf16.msra.mxu0 %v1462
    %1671 = vmatprep.subr.bf16.mxu0 %v1466
    %1672 = vmatpush1.bf16.msra.mxu0 %v1465
    %1673 = vmatprep.subr.bf16.mxu0 %v1469
    %1674 = vmatpush1.bf16.msra.mxu0 %v1468
    %1675 = vmatprep.subr.bf16.mxu0 %v1472
    %1676 = vmatpush1.bf16.msra.mxu0 %v1471
    %1677 = vmatprep.subr.bf16.mxu0 %v1475
    %1678 = vmatpush1.bf16.msra.mxu0 %v1474
    %1679 = vmatprep.subr.bf16.mxu0 %v1478
    %1680 = vmatpush1.bf16.msra.mxu0 %v1477
    %1681 = vmatprep.subr.bf16.mxu0 0
    %1682 = vmatpush1.bf16.msra.mxu0 0
    %1683 = vmatprep.subr.bf16.mxu0 0
    %1684 = vmatpush1.bf16.msra.mxu0 0
    %1685 = vmatprep.subr.bf16.mxu0 0
    %1686 = vmatpush1.bf16.msra.mxu0 0
    %1687 = vmatprep.subr.bf16.mxu0 0
    %1688 = vmatpush1.bf16.msra.mxu0 0
    %1689 = vmatprep.subr.bf16.mxu0 0
    %1690 = vmatpush1.bf16.msra.mxu0 0
    %1691 = vmatprep.subr.bf16.mxu0 0
    %1692 = vmatpush1.bf16.msra.mxu0 0
    %1693 = vmatprep.subr.bf16.mxu0 0
    %1694 = vmatpush1.bf16.msra.mxu0 0
    %1695 = vmatprep.subr.bf16.mxu0 0
    %1696 = vmatpush1.bf16.msra.mxu0 0
    %1697 = vmatprep.mubr.bf16.mxu0 0
    %1698 = vmatmul.mubr.bf16.gmra.mrb[0].mxu0 %v116
    %v1699 = vpop.f32.mrb[0].mxu0
    %v1700 = vadd.f32 %v1587, %v1699
    %v1701 = vpop.f32.mrb[0].mxu0
    %v1702 = vadd.f32 %v1589, %v1701
    %v1703 = vpop.f32.mrb[0].mxu0
    %v1704 = vadd.f32 %v1591, %v1703
    %v1705 = vpop.f32.mrb[0].mxu0
    %v1706 = vadd.f32 %v1593, %v1705
    %1707 = vmatprep.mubr.bf16.mxu0 0
    %1708 = vmatmul.mubr.bf16.gmra.mrb[0].mxu0 %v119
    %v1709 = vpop.f32.mrb[0].mxu0
    %v1710 = vadd.f32 %v1597, %v1709
    %v1711 = vpop.f32.mrb[0].mxu0
    %v1712 = vadd.f32 %v1599, %v1711
    %v1713 = vpop.f32.mrb[0].mxu0
    %v1714 = vadd.f32 %v1601, %v1713
    %v1715 = vpop.f32.mrb[0].mxu0
    %v1716 = vadd.f32 %v1603, %v1715
    %1717 = vmatprep.mubr.bf16.mxu0 0
    %1718 = vmatmul.mubr.bf16.gmra.mrb[0].mxu0 %v122
    %v1719 = vpop.f32.mrb[0].mxu0
    %v1720 = vadd.f32 %v1607, %v1719
    %v1721 = vpop.f32.mrb[0].mxu0
    %v1722 = vadd.f32 %v1609, %v1721
    %v1723 = vpop.f32.mrb[0].mxu0
    %v1724 = vadd.f32 %v1611, %v1723
    %v1725 = vpop.f32.mrb[0].mxu0
    %v1726 = vadd.f32 %v1613, %v1725
    %1727 = vmatprep.mubr.bf16.mxu0 0
    %1728 = vmatmul.mubr.bf16.gmra.mrb[0].mxu0 %v125
    %v1729 = vpop.f32.mrb[0].mxu0
    %v1730 = vadd.f32 %v1617, %v1729
    %v1731 = vpop.f32.mrb[0].mxu0
    %v1732 = vadd.f32 %v1619, %v1731
    %v1733 = vpop.f32.mrb[0].mxu0
    %v1734 = vadd.f32 %v1621, %v1733
    %v1735 = vpop.f32.mrb[0].mxu0
    %v1736 = vadd.f32 %v1623, %v1735
    %1737 = vmatprep.mubr.bf16.mxu0 0
    %1738 = vmatmul.mubr.bf16.gmra.mrb[0].mxu0 %v128
    %v1739 = vpop.f32.mrb[0].mxu0
    %v1740 = vadd.f32 %v1627, %v1739
    %v1741 = vpop.f32.mrb[0].mxu0
    %v1742 = vadd.f32 %v1629, %v1741
    %v1743 = vpop.f32.mrb[0].mxu0
    %v1744 = vadd.f32 %v1631, %v1743
    %v1745 = vpop.f32.mrb[0].mxu0
    %v1746 = vadd.f32 %v1633, %v1745
    %1747 = vmatprep.mubr.bf16.mxu0 0
    %1748 = vmatmul.mubr.bf16.gmra.mrb[0].mxu0 %v131
    %v1749 = vpop.f32.mrb[0].mxu0
    %v1750 = vadd.f32 %v1637, %v1749
    %v1751 = vpop.f32.mrb[0].mxu0
    %v1752 = vadd.f32 %v1639, %v1751
    %v1753 = vpop.f32.mrb[0].mxu0
    %v1754 = vadd.f32 %v1641, %v1753
    %v1755 = vpop.f32.mrb[0].mxu0
    %v1756 = vadd.f32 %v1643, %v1755
    %1757 = vmatprep.mubr.bf16.mxu0 0
    %1758 = vmatmul.mubr.bf16.gmra.mrb[0].mxu0 %v134
    %v1759 = vpop.f32.mrb[0].mxu0
    %v1760 = vadd.f32 %v1647, %v1759
    %v1761 = vpop.f32.mrb[0].mxu0
    %v1762 = vadd.f32 %v1649, %v1761
    %v1763 = vpop.f32.mrb[0].mxu0
    %v1764 = vadd.f32 %v1651, %v1763
    %v1765 = vpop.f32.mrb[0].mxu0
    %v1766 = vadd.f32 %v1653, %v1765
    %1767 = vmatprep.mubr.bf16.mxu0 0
    %1768 = vmatmul.mubr.bf16.gmra.mrb[0].mxu0 %v137
    %v1769 = vpop.f32.mrb[0].mxu0
    %v1770 = vadd.f32 %v1657, %v1769
    %v1771 = vpop.f32.mrb[0].mxu0
    %v1772 = vadd.f32 %v1659, %v1771
    %v1773 = vpop.f32.mrb[0].mxu0
    %v1774 = vadd.f32 %v1661, %v1773
    %v1775 = vpop.f32.mrb[0].mxu0
    %v1776 = vadd.f32 %v1663, %v1775
    %1777 = vdwg.mxu0
    %1778 = vmatprep.subr.bf16.mxu0 0
    %1779 = vmatpush1.bf16.msra.mxu0 %v1410
    %1780 = vmatprep.subr.bf16.mxu0 0
    %1781 = vmatpush1.bf16.msra.mxu0 %v1413
    %1782 = vmatprep.subr.bf16.mxu0 0
    %1783 = vmatpush1.bf16.msra.mxu0 %v1416
    %1784 = vmatprep.subr.bf16.mxu0 0
    %1785 = vmatpush1.bf16.msra.mxu0 %v1419
    %1786 = vmatprep.subr.bf16.mxu0 0
    %1787 = vmatpush1.bf16.msra.mxu0 %v1422
    %1788 = vmatprep.subr.bf16.mxu0 0
    %1789 = vmatpush1.bf16.msra.mxu0 %v1425
    %1790 = vmatprep.subr.bf16.mxu0 0
    %1791 = vmatpush1.bf16.msra.mxu0 %v1428
    %1792 = vmatprep.subr.bf16.mxu0 0
    %1793 = vmatpush1.bf16.msra.mxu0 %v1431
    %1794 = vmatprep.subr.bf16.mxu0 0
    %1795 = vmatpush1.bf16.msra.mxu0 %v1434
    %1796 = vmatprep.subr.bf16.mxu0 0
    %1797 = vmatpush1.bf16.msra.mxu0 %v1437
    %1798 = vmatprep.subr.bf16.mxu0 0
    %1799 = vmatpush1.bf16.msra.mxu0 %v1440
    %1800 = vmatprep.subr.bf16.mxu0 0
    %1801 = vmatpush1.bf16.msra.mxu0 %v1443
    %1802 = vmatprep.subr.bf16.mxu0 0
    %1803 = vmatpush1.bf16.msra.mxu0 %v1446
    %1804 = vmatprep.subr.bf16.mxu0 0
    %1805 = vmatpush1.bf16.msra.mxu0 %v1449
    %1806 = vmatprep.subr.bf16.mxu0 0
    %1807 = vmatpush1.bf16.msra.mxu0 %v1452
    %1808 = vmatprep.subr.bf16.mxu0 0
    %1809 = vmatpush1.bf16.msra.mxu0 %v1455
    %1810 = vmatprep.mubr.bf16.mxu0 %v115
    %1811 = vmatmul.mubr.bf16.gmra.mrb[0].mxu0 %v114
    %v1812 = vpop.f32.mrb[0].mxu0
    %v1813 = vadd.f32 %v1164, %v1812
    %v1814 = vpop.f32.mrb[0].mxu0
    %v1815 = vpop.f32.mrb[0].mxu0
    %v1816 = vadd.f32 %v1164, %v1815
    %v1817 = vpop.f32.mrb[0].mxu0
    %1818 = vmatprep.mubr.bf16.mxu0 %v118
    %1819 = vmatmul.mubr.bf16.gmra.mrb[0].mxu0 %v117
    %v1820 = vpop.f32.mrb[0].mxu0
    %v1821 = vadd.f32 %v1164, %v1820
    %v1822 = vpop.f32.mrb[0].mxu0
    %v1823 = vpop.f32.mrb[0].mxu0
    %v1824 = vadd.f32 %v1164, %v1823
    %v1825 = vpop.f32.mrb[0].mxu0
    %1826 = vmatprep.mubr.bf16.mxu0 %v121
    %1827 = vmatmul.mubr.bf16.gmra.mrb[0].mxu0 %v120
    %v1828 = vpop.f32.mrb[0].mxu0
    %v1829 = vadd.f32 %v1164, %v1828
    %v1830 = vpop.f32.mrb[0].mxu0
    %v1831 = vpop.f32.mrb[0].mxu0
    %v1832 = vadd.f32 %v1164, %v1831
    %v1833 = vpop.f32.mrb[0].mxu0
    %1834 = vmatprep.mubr.bf16.mxu0 %v124
    %1835 = vmatmul.mubr.bf16.gmra.mrb[0].mxu0 %v123
    %v1836 = vpop.f32.mrb[0].mxu0
    %v1837 = vadd.f32 %v1164, %v1836
    %v1838 = vpop.f32.mrb[0].mxu0
    %v1839 = vpop.f32.mrb[0].mxu0
    %v1840 = vadd.f32 %v1164, %v1839
    %v1841 = vpop.f32.mrb[0].mxu0
    %1842 = vmatprep.mubr.bf16.mxu0 %v127
    %1843 = vmatmul.mubr.bf16.gmra.mrb[0].mxu0 %v126
    %v1844 = vpop.f32.mrb[0].mxu0
    %v1845 = vadd.f32 %v1164, %v1844
    %v1846 = vpop.f32.mrb[0].mxu0
    %v1847 = vpop.f32.mrb[0].mxu0
    %v1848 = vadd.f32 %v1164, %v1847
    %v1849 = vpop.f32.mrb[0].mxu0
    %1850 = vmatprep.mubr.bf16.mxu0 %v130
    %1851 = vmatmul.mubr.bf16.gmra.mrb[0].mxu0 %v129
    %v1852 = vpop.f32.mrb[0].mxu0
    %v1853 = vadd.f32 %v1164, %v1852
    %v1854 = vpop.f32.mrb[0].mxu0
    %v1855 = vpop.f32.mrb[0].mxu0
    %v1856 = vadd.f32 %v1164, %v1855
    %v1857 = vpop.f32.mrb[0].mxu0
    %1858 = vmatprep.mubr.bf16.mxu0 %v133
    %1859 = vmatmul.mubr.bf16.gmra.mrb[0].mxu0 %v132
    %v1860 = vpop.f32.mrb[0].mxu0
    %v1861 = vadd.f32 %v1164, %v1860
    %v1862 = vpop.f32.mrb[0].mxu0
    %v1863 = vpop.f32.mrb[0].mxu0
    %v1864 = vadd.f32 %v1164, %v1863
    %v1865 = vpop.f32.mrb[0].mxu0
    %1866 = vmatprep.mubr.bf16.mxu0 %v136
    %1867 = vmatmul.mubr.bf16.gmra.mrb[0].mxu0 %v135
    %v1868 = vpop.f32.mrb[0].mxu0
    %v1869 = vadd.f32 %v1164, %v1868
    %v1870 = vpop.f32.mrb[0].mxu0
    %v1871 = vpop.f32.mrb[0].mxu0
    %v1872 = vadd.f32 %v1164, %v1871
    %v1873 = vpop.f32.mrb[0].mxu0
    %1874 = vdwg.mxu0
    %1875 = vmatprep.subr.bf16.mxu0 0
    %1876 = vmatpush1.bf16.msra.mxu0 %v1458
    %1877 = vmatprep.subr.bf16.mxu0 0
    %1878 = vmatpush1.bf16.msra.mxu0 %v1461
    %1879 = vmatprep.subr.bf16.mxu0 0
    %1880 = vmatpush1.bf16.msra.mxu0 %v1464
    %1881 = vmatprep.subr.bf16.mxu0 0
    %1882 = vmatpush1.bf16.msra.mxu0 %v1467
    %1883 = vmatprep.subr.bf16.mxu0 0
    %1884 = vmatpush1.bf16.msra.mxu0 %v1470
    %1885 = vmatprep.subr.bf16.mxu0 0
    %1886 = vmatpush1.bf16.msra.mxu0 %v1473
    %1887 = vmatprep.subr.bf16.mxu0 0
    %1888 = vmatpush1.bf16.msra.mxu0 %v1476
    %1889 = vmatprep.subr.bf16.mxu0 0
    %1890 = vmatpush1.bf16.msra.mxu0 %v1479
    %1891 = vmatprep.subr.bf16.mxu0 0
    %1892 = vmatpush1.bf16.msra.mxu0 0
    %1893 = vmatprep.subr.bf16.mxu0 0
    %1894 = vmatpush1.bf16.msra.mxu0 0
    %1895 = vmatprep.subr.bf16.mxu0 0
    %1896 = vmatpush1.bf16.msra.mxu0 0
    %1897 = vmatprep.subr.bf16.mxu0 0
    %1898 = vmatpush1.bf16.msra.mxu0 0
    %1899 = vmatprep.subr.bf16.mxu0 0
    %1900 = vmatpush1.bf16.msra.mxu0 0
    %1901 = vmatprep.subr.bf16.mxu0 0
    %1902 = vmatpush1.bf16.msra.mxu0 0
    %1903 = vmatprep.subr.bf16.mxu0 0
    %1904 = vmatpush1.bf16.msra.mxu0 0
    %1905 = vmatprep.subr.bf16.mxu0 0
    %1906 = vmatpush1.bf16.msra.mxu0 0
    %1907 = vmatprep.mubr.bf16.mxu0 0
    %1908 = vmatmul.mubr.bf16.gmra.mrb[0].mxu0 %v116
    %v1909 = vpop.f32.mrb[0].mxu0
    %v1910 = vadd.f32 %v1813, %v1909
    %v1911 = vpop.f32.mrb[0].mxu0
    %v1912 = vpop.f32.mrb[0].mxu0
    %v1913 = vadd.f32 %v1816, %v1912
    %v1914 = vpop.f32.mrb[0].mxu0
    %1915 = vmatprep.mubr.bf16.mxu0 0
    %1916 = vmatmul.mubr.bf16.gmra.mrb[0].mxu0 %v119
    %v1917 = vpop.f32.mrb[0].mxu0
    %v1918 = vadd.f32 %v1821, %v1917
    %v1919 = vpop.f32.mrb[0].mxu0
    %v1920 = vpop.f32.mrb[0].mxu0
    %v1921 = vadd.f32 %v1824, %v1920
    %v1922 = vpop.f32.mrb[0].mxu0
    %1923 = vmatprep.mubr.bf16.mxu0 0
    %1924 = vmatmul.mubr.bf16.gmra.mrb[0].mxu0 %v122
    %v1925 = vpop.f32.mrb[0].mxu0
    %v1926 = vadd.f32 %v1829, %v1925
    %v1927 = vpop.f32.mrb[0].mxu0
    %v1928 = vpop.f32.mrb[0].mxu0
    %v1929 = vadd.f32 %v1832, %v1928
    %v1930 = vpop.f32.mrb[0].mxu0
    %1931 = vmatprep.mubr.bf16.mxu0 0
    %1932 = vmatmul.mubr.bf16.gmra.mrb[0].mxu0 %v125
    %v1933 = vpop.f32.mrb[0].mxu0
    %v1934 = vadd.f32 %v1837, %v1933
    %v1935 = vpop.f32.mrb[0].mxu0
    %v1936 = vpop.f32.mrb[0].mxu0
    %v1937 = vadd.f32 %v1840, %v1936
    %v1938 = vpop.f32.mrb[0].mxu0
    %1939 = vmatprep.mubr.bf16.mxu0 0
    %1940 = vmatmul.mubr.bf16.gmra.mrb[0].mxu0 %v128
    %v1941 = vpop.f32.mrb[0].mxu0
    %v1942 = vadd.f32 %v1845, %v1941
    %v1943 = vpop.f32.mrb[0].mxu0
    %v1944 = vpop.f32.mrb[0].mxu0
    %v1945 = vadd.f32 %v1848, %v1944
    %v1946 = vpop.f32.mrb[0].mxu0
    %1947 = vmatprep.mubr.bf16.mxu0 0
    %1948 = vmatmul.mubr.bf16.gmra.mrb[0].mxu0 %v131
    %v1949 = vpop.f32.mrb[0].mxu0
    %v1950 = vadd.f32 %v1853, %v1949
    %v1951 = vpop.f32.mrb[0].mxu0
    %v1952 = vpop.f32.mrb[0].mxu0
    %v1953 = vadd.f32 %v1856, %v1952
    %v1954 = vpop.f32.mrb[0].mxu0
    %1955 = vmatprep.mubr.bf16.mxu0 0
    %1956 = vmatmul.mubr.bf16.gmra.mrb[0].mxu0 %v134
    %v1957 = vpop.f32.mrb[0].mxu0
    %v1958 = vadd.f32 %v1861, %v1957
    %v1959 = vpop.f32.mrb[0].mxu0
    %v1960 = vpop.f32.mrb[0].mxu0
    %v1961 = vadd.f32 %v1864, %v1960
    %v1962 = vpop.f32.mrb[0].mxu0
    %1963 = vmatprep.mubr.bf16.mxu0 0
    %1964 = vmatmul.mubr.bf16.gmra.mrb[0].mxu0 %v137
    %v1965 = vpop.f32.mrb[0].mxu0
    %v1966 = vadd.f32 %v1869, %v1965
    %v1967 = vpop.f32.mrb[0].mxu0
    %v1968 = vpop.f32.mrb[0].mxu0
    %v1969 = vadd.f32 %v1872, %v1968
    %v1970 = vpop.f32.mrb[0].mxu0
    %1971 = vdwg.mxu0
    %1972 = vxpose.xlu0.b32.start [1/16] %v783, 128
    %1973 = vxpose.xlu0.b32.cont [2/16] %v787, 128
    %1974 = vxpose.xlu0.b32.cont [3/16] %v793, 128
    %1975 = vxpose.xlu0.b32.cont [4/16] %v797, 128
    %1976 = vxpose.xlu0.b32.cont [5/16] %v803, 128
    %1977 = vxpose.xlu0.b32.cont [6/16] %v807, 128
    %1978 = vxpose.xlu0.b32.cont [7/16] %v813, 128
    %1979 = vxpose.xlu0.b32.cont [8/16] %v817, 128
    %1980 = vxpose.xlu0.b32.cont [9/16] %v823, 128
    %1981 = vxpose.xlu0.b32.cont [10/16] %v827, 128
    %1982 = vxpose.xlu0.b32.cont [11/16] %v833, 128
    %1983 = vxpose.xlu0.b32.cont [12/16] %v837, 128
    %1984 = vxpose.xlu0.b32.cont [13/16] %v843, 128
    %1985 = vxpose.xlu0.b32.cont [14/16] %v847, 128
    %1986 = vxpose.xlu0.b32.cont [15/16] %v853, 128
    %1987 = vxpose.xlu0.b32.end [16/16] %v857, 128
    %v1988 = vpop.trf.xlu0
    %v1989 = vpop.trf.xlu0
    %v1990 = vpop.trf.xlu0
    %v1991 = vpop.trf.xlu0
    %v1992 = vpop.trf.xlu0
    %v1993 = vpop.trf.xlu0
    %v1994 = vpop.trf.xlu0
    %v1995 = vpop.trf.xlu0
    %v1996 = vpop.trf.xlu0
    %v1997 = vpop.trf.xlu0
    %v1998 = vpop.trf.xlu0
    %v1999 = vpop.trf.xlu0
    %v2000 = vpop.trf.xlu0
    %v2001 = vpop.trf.xlu0
    %v2002 = vpop.trf.xlu0
    %v2003 = vpop.trf.xlu0
    %2004 = vxpose.xlu0.b32.start [1/16] %v785, 128
    %2005 = vxpose.xlu0.b32.cont [2/16] %v789, 128
    %2006 = vxpose.xlu0.b32.cont [3/16] %v795, 128
    %2007 = vxpose.xlu0.b32.cont [4/16] %v799, 128
    %2008 = vxpose.xlu0.b32.cont [5/16] %v805, 128
    %2009 = vxpose.xlu0.b32.cont [6/16] %v809, 128
    %2010 = vxpose.xlu0.b32.cont [7/16] %v815, 128
    %2011 = vxpose.xlu0.b32.cont [8/16] %v819, 128
    %2012 = vxpose.xlu0.b32.cont [9/16] %v825, 128
    %2013 = vxpose.xlu0.b32.cont [10/16] %v829, 128
    %2014 = vxpose.xlu0.b32.cont [11/16] %v835, 128
    %2015 = vxpose.xlu0.b32.cont [12/16] %v839, 128
    %2016 = vxpose.xlu0.b32.cont [13/16] %v845, 128
    %2017 = vxpose.xlu0.b32.cont [14/16] %v849, 128
    %2018 = vxpose.xlu0.b32.cont [15/16] %v855, 128
    %2019 = vxpose.xlu0.b32.end [16/16] %v859, 128
    %v2020 = vpop.trf.xlu0
    %v2021 = vpop.trf.xlu0
    %v2022 = vpop.trf.xlu0
    %v2023 = vpop.trf.xlu0
    %v2024 = vpop.trf.xlu0
    %v2025 = vpop.trf.xlu0
    %v2026 = vpop.trf.xlu0
    %v2027 = vpop.trf.xlu0
    %v2028 = vpop.trf.xlu0
    %v2029 = vpop.trf.xlu0
    %v2030 = vpop.trf.xlu0
    %v2031 = vpop.trf.xlu0
    %v2032 = vpop.trf.xlu0
    %v2033 = vpop.trf.xlu0
    %v2034 = vpop.trf.xlu0
    %v2035 = vpop.trf.xlu0
    %2036 = vxpose.xlu0.b32.start [1/16] %v993, 128
    %2037 = vxpose.xlu0.b32.cont [2/16] %v996, 128
    %2038 = vxpose.xlu0.b32.cont [3/16] %v1001, 128
    %2039 = vxpose.xlu0.b32.cont [4/16] %v1004, 128
    %2040 = vxpose.xlu0.b32.cont [5/16] %v1009, 128
    %2041 = vxpose.xlu0.b32.cont [6/16] %v1012, 128
    %2042 = vxpose.xlu0.b32.cont [7/16] %v1017, 128
    %2043 = vxpose.xlu0.b32.cont [8/16] %v1020, 128
    %2044 = vxpose.xlu0.b32.cont [9/16] %v1025, 128
    %2045 = vxpose.xlu0.b32.cont [10/16] %v1028, 128
    %2046 = vxpose.xlu0.b32.cont [11/16] %v1033, 128
    %2047 = vxpose.xlu0.b32.cont [12/16] %v1036, 128
    %2048 = vxpose.xlu0.b32.cont [13/16] %v1041, 128
    %2049 = vxpose.xlu0.b32.cont [14/16] %v1044, 128
    %2050 = vxpose.xlu0.b32.cont [15/16] %v1049, 128
    %2051 = vxpose.xlu0.b32.end [16/16] %v1052, 128
    %v2052 = vpop.trf.xlu0
    %v2053 = vpop.trf.xlu0
    %v2054 = vpop.trf.xlu0
    %v2055 = vpop.trf.xlu0
    %v2056 = vpop.trf.xlu0
    %v2057 = vpop.trf.xlu0
    %v2058 = vpop.trf.xlu0
    %v2059 = vpop.trf.xlu0
    %v2060 = vpop.trf.xlu0
    %v2061 = vpop.trf.xlu0
    %v2062 = vpop.trf.xlu0
    %v2063 = vpop.trf.xlu0
    %v2064 = vpop.trf.xlu0
    %v2065 = vpop.trf.xlu0
    %v2066 = vpop.trf.xlu0
    %v2067 = vpop.trf.xlu0
    %v2068 = vpack.c.bf16 %v1989, %v1988
    %v2069 = vpack.c.bf16 %v1991, %v1990
    %v2070 = vpack.c.bf16 %v1993, %v1992
    %v2071 = vpack.c.bf16 %v1995, %v1994
    %v2072 = vpack.c.bf16 %v1997, %v1996
    %v2073 = vpack.c.bf16 %v1999, %v1998
    %v2074 = vpack.c.bf16 %v2001, %v2000
    %v2075 = vpack.c.bf16 %v2003, %v2002
    %v2076 = vpack.c.bf16 %v2021, %v2020
    %v2077 = vpack.c.bf16 %v2023, %v2022
    %v2078 = vpack.c.bf16 %v2025, %v2024
    %v2079 = vpack.c.bf16 %v2027, %v2026
    %v2080 = vpack.c.bf16 %v2029, %v2028
    %v2081 = vpack.c.bf16 %v2031, %v2030
    %v2082 = vpack.c.bf16 %v2033, %v2032
    %v2083 = vpack.c.bf16 %v2035, %v2034
    %v2084 = vpack.c.bf16 %v2053, %v2052
    %v2085 = vpack.c.bf16 %v2055, %v2054
    %v2086 = vpack.c.bf16 %v2057, %v2056
    %v2087 = vpack.c.bf16 %v2059, %v2058
    %v2088 = vpack.c.bf16 %v2061, %v2060
    %v2089 = vpack.c.bf16 %v2063, %v2062
    %v2090 = vpack.c.bf16 %v2065, %v2064
    %v2091 = vpack.c.bf16 %v2067, %v2066
    %v2116 = vunpack.c.l.b16 %v2068
    %v2117 = vunpack.c.h.b16 %v2068
    %v2118 = vunpack.c.l.b16 %v2069
    %v2119 = vunpack.c.h.b16 %v2069
    %v2120 = vunpack.c.l.b16 %v2070
    %v2121 = vunpack.c.h.b16 %v2070
    %v2122 = vunpack.c.l.b16 %v2071
    %v2123 = vunpack.c.h.b16 %v2071
    %v2124 = vunpack.c.l.b16 %v2072
    %v2125 = vunpack.c.h.b16 %v2072
    %v2126 = vunpack.c.l.b16 %v2073
    %v2127 = vunpack.c.h.b16 %v2073
    %v2128 = vunpack.c.l.b16 %v2074
    %v2129 = vunpack.c.h.b16 %v2074
    %v2130 = vunpack.c.l.b16 %v2075
    %v2131 = vunpack.c.h.b16 %v2075
    %v2132 = vunpack.c.l.b16 %v2076
    %v2133 = vunpack.c.h.b16 %v2076
    %v2134 = vunpack.c.l.b16 %v2077
    %v2135 = vunpack.c.h.b16 %v2077
    %v2136 = vunpack.c.l.b16 %v2078
    %v2137 = vunpack.c.h.b16 %v2078
    %v2138 = vunpack.c.l.b16 %v2079
    %v2139 = vunpack.c.h.b16 %v2079
    %v2140 = vunpack.c.l.b16 %v2080
    %v2141 = vunpack.c.h.b16 %v2080
    %v2142 = vunpack.c.l.b16 %v2081
    %v2143 = vunpack.c.h.b16 %v2081
    %v2144 = vunpack.c.l.b16 %v2082
    %v2145 = vunpack.c.h.b16 %v2082
    %v2146 = vunpack.c.l.b16 %v2083
    %v2147 = vunpack.c.h.b16 %v2083
    %v2148 = vunpack.c.l.b16 %v2084
    %v2149 = vunpack.c.h.b16 %v2084
    %v2150 = vunpack.c.l.b16 %v2085
    %v2151 = vunpack.c.h.b16 %v2085
    %v2152 = vunpack.c.l.b16 %v2086
    %v2153 = vunpack.c.h.b16 %v2086
    %v2154 = vunpack.c.l.b16 %v2087
    %v2155 = vunpack.c.h.b16 %v2087
    %v2156 = vunpack.c.l.b16 %v2088
    %v2157 = vunpack.c.h.b16 %v2088
    %v2158 = vunpack.c.l.b16 %v2089
    %v2159 = vunpack.c.h.b16 %v2089
    %v2160 = vunpack.c.l.b16 %v2090
    %v2161 = vunpack.c.h.b16 %v2090
    %v2162 = vunpack.c.l.b16 %v2091
    %v2163 = vunpack.c.h.b16 %v2091
    %v2164 = vpack.c.b16 %v2116, %v2116
    %v2165 = vpack.c.b16 %v2117, %v2117
    %v2166 = vpack.c.b16 %v2118, %v2118
    %v2167 = vpack.c.b16 %v2119, %v2119
    %v2168 = vpack.c.b16 %v2120, %v2120
    %v2169 = vpack.c.b16 %v2121, %v2121
    %v2170 = vpack.c.b16 %v2122, %v2122
    %v2171 = vpack.c.b16 %v2123, %v2123
    %v2172 = vpack.c.b16 %v2124, %v2124
    %v2173 = vpack.c.b16 %v2125, %v2125
    %v2174 = vpack.c.b16 %v2126, %v2126
    %v2175 = vpack.c.b16 %v2127, %v2127
    %v2176 = vpack.c.b16 %v2128, %v2128
    %v2177 = vpack.c.b16 %v2129, %v2129
    %v2178 = vpack.c.b16 %v2130, %v2130
    %v2179 = vpack.c.b16 %v2131, %v2131
    %v2180 = vpack.c.b16 %v2132, %v2132
    %v2181 = vpack.c.b16 %v2133, %v2133
    %v2182 = vpack.c.b16 %v2134, %v2134
    %v2183 = vpack.c.b16 %v2135, %v2135
    %v2184 = vpack.c.b16 %v2136, %v2136
    %v2185 = vpack.c.b16 %v2137, %v2137
    %v2186 = vpack.c.b16 %v2138, %v2138
    %v2187 = vpack.c.b16 %v2139, %v2139
    %v2188 = vpack.c.b16 %v2140, %v2140
    %v2189 = vpack.c.b16 %v2141, %v2141
    %v2190 = vpack.c.b16 %v2142, %v2142
    %v2191 = vpack.c.b16 %v2143, %v2143
    %v2192 = vpack.c.b16 %v2144, %v2144
    %v2193 = vpack.c.b16 %v2145, %v2145
    %v2194 = vpack.c.b16 %v2146, %v2146
    %v2195 = vpack.c.b16 %v2147, %v2147
    %v2196 = vpack.c.b16 %v2148, %v2148
    %v2197 = vpack.c.b16 %v2149, %v2149
    %v2198 = vpack.c.b16 %v2150, %v2150
    %v2199 = vpack.c.b16 %v2151, %v2151
    %v2200 = vpack.c.b16 %v2152, %v2152
    %v2201 = vpack.c.b16 %v2153, %v2153
    %v2202 = vpack.c.b16 %v2154, %v2154
    %v2203 = vpack.c.b16 %v2155, %v2155
    %v2204 = vpack.c.b16 %v2156, %v2156
    %v2205 = vpack.c.b16 %v2157, %v2157
    %v2206 = vpack.c.b16 %v2158, %v2158
    %v2207 = vpack.c.b16 %v2159, %v2159
    %v2208 = vpack.c.b16 %v2160, %v2160
    %v2209 = vpack.c.b16 %v2161, %v2161
    %v2210 = vpack.c.b16 %v2162, %v2162
    %v2211 = vpack.c.b16 %v2163, %v2163
    %2260 = vst [vmem:[#allocation8] sm:$0xf] %v2164
    %2261 = vst [vmem:[#allocation8 + $0x4] sm:$0xf] %v2165
    %2262 = vst [vmem:[#allocation8 + $0x8] sm:$0xf] %v2166
    %2263 = vst [vmem:[#allocation8 + $0xc] sm:$0xf] %v2167
    %2264 = vst [vmem:[#allocation8 + $0x10] sm:$0xf] %v2168
    %2265 = vst [vmem:[#allocation8 + $0x14] sm:$0xf] %v2169
    %2266 = vst [vmem:[#allocation8 + $0x18] sm:$0xf] %v2170
    %2267 = vst [vmem:[#allocation8 + $0x1c] sm:$0xf] %v2171
    %2268 = vst [vmem:[#allocation8 + $0x20] sm:$0xf] %v2172
    %2269 = vst [vmem:[#allocation8 + $0x24] sm:$0xf] %v2173
    %2270 = vst [vmem:[#allocation8 + $0x28] sm:$0xf] %v2174
    %2271 = vst [vmem:[#allocation8 + $0x2c] sm:$0xf] %v2175
    %2272 = vst [vmem:[#allocation8 + $0x30] sm:$0xf] %v2176
    %2273 = vst [vmem:[#allocation8 + $0x34] sm:$0xf] %v2177
    %2274 = vst [vmem:[#allocation8 + $0x38] sm:$0xf] %v2178
    %2275 = vst [vmem:[#allocation8 + $0x3c] sm:$0xf] %v2179
    %2276 = vst [vmem:[#allocation8 + $0x40] sm:$0xf] %v2180
    %2277 = vst [vmem:[#allocation8 + $0x44] sm:$0xf] %v2181
    %2278 = vst [vmem:[#allocation8 + $0x48] sm:$0xf] %v2182
    %2279 = vst [vmem:[#allocation8 + $0x4c] sm:$0xf] %v2183
    %2280 = vst [vmem:[#allocation8 + $0x50] sm:$0xf] %v2184
    %2281 = vst [vmem:[#allocation8 + $0x54] sm:$0xf] %v2185
    %2282 = vst [vmem:[#allocation8 + $0x58] sm:$0xf] %v2186
    %2283 = vst [vmem:[#allocation8 + $0x5c] sm:$0xf] %v2187
    %2284 = vst [vmem:[#allocation8 + $0x60] sm:$0xf] %v2188
    %2285 = vst [vmem:[#allocation8 + $0x64] sm:$0xf] %v2189
    %2286 = vst [vmem:[#allocation8 + $0x68] sm:$0xf] %v2190
    %2287 = vst [vmem:[#allocation8 + $0x6c] sm:$0xf] %v2191
    %2288 = vst [vmem:[#allocation8 + $0x70] sm:$0xf] %v2192
    %2289 = vst [vmem:[#allocation8 + $0x74] sm:$0xf] %v2193
    %2290 = vst [vmem:[#allocation8 + $0x78] sm:$0xf] %v2194
    %2291 = vst [vmem:[#allocation8 + $0x7c] sm:$0xf] %v2195
    %2292 = vst [vmem:[#allocation8 + $0x80] sm:$0xf] %v2196
    %2293 = vst [vmem:[#allocation8 + $0x84] sm:$0xf] %v2197
    %2294 = vst [vmem:[#allocation8 + $0x88] sm:$0xf] %v2198
    %2295 = vst [vmem:[#allocation8 + $0x8c] sm:$0xf] %v2199
    %2296 = vst [vmem:[#allocation8 + $0x90] sm:$0xf] %v2200
    %2297 = vst [vmem:[#allocation8 + $0x94] sm:$0xf] %v2201
    %2298 = vst [vmem:[#allocation8 + $0x98] sm:$0xf] %v2202
    %2299 = vst [vmem:[#allocation8 + $0x9c] sm:$0xf] %v2203
    %2300 = vst [vmem:[#allocation8 + $0xa0] sm:$0xf] %v2204
    %2301 = vst [vmem:[#allocation8 + $0xa4] sm:$0xf] %v2205
    %2302 = vst [vmem:[#allocation8 + $0xa8] sm:$0xf] %v2206
    %2303 = vst [vmem:[#allocation8 + $0xac] sm:$0xf] %v2207
    %2304 = vst [vmem:[#allocation8 + $0xb0] sm:$0xf] %v2208
    %2305 = vst [vmem:[#allocation8 + $0xb4] sm:$0xf] %v2209
    %2306 = vst [vmem:[#allocation8 + $0xb8] sm:$0xf] %v2210
    %2307 = vst [vmem:[#allocation8 + $0xbc] sm:$0xf] %v2211
    %v2308 = vpack.c.bf16 %v1704, %v1700
    %v2309 = vpack.c.bf16 %v1706, %v1702
    %v2310 = vpack.c.bf16 %v1913, %v1910
    %v2311 = vpack.c.bf16 %v1714, %v1710
    %v2312 = vpack.c.bf16 %v1716, %v1712
    %v2313 = vpack.c.bf16 %v1921, %v1918
    %v2314 = vpack.c.bf16 %v1724, %v1720
    %v2315 = vpack.c.bf16 %v1726, %v1722
    %v2316 = vpack.c.bf16 %v1929, %v1926
    %v2317 = vpack.c.bf16 %v1734, %v1730
    %v2318 = vpack.c.bf16 %v1736, %v1732
    %v2319 = vpack.c.bf16 %v1937, %v1934
    %v2320 = vpack.c.bf16 %v1744, %v1740
    %v2321 = vpack.c.bf16 %v1746, %v1742
    %v2322 = vpack.c.bf16 %v1945, %v1942
    %v2323 = vpack.c.bf16 %v1754, %v1750
    %v2324 = vpack.c.bf16 %v1756, %v1752
    %v2325 = vpack.c.bf16 %v1953, %v1950
    %v2326 = vpack.c.bf16 %v1764, %v1760
    %v2327 = vpack.c.bf16 %v1766, %v1762
    %v2328 = vpack.c.bf16 %v1961, %v1958
    %v2329 = vpack.c.bf16 %v1774, %v1770
    %v2330 = vpack.c.bf16 %v1776, %v1772
    %v2331 = vpack.c.bf16 %v1969, %v1966
    %v2356 = vunpack.c.l.b16 %v2308
    %v2357 = vunpack.c.l.b16 %v2309
    %v2358 = vunpack.c.l.b16 %v2310
    %v2359 = vunpack.c.h.b16 %v2308
    %v2360 = vunpack.c.h.b16 %v2309
    %v2361 = vunpack.c.h.b16 %v2310
    %v2362 = vunpack.c.l.b16 %v2311
    %v2363 = vunpack.c.l.b16 %v2312
    %v2364 = vunpack.c.l.b16 %v2313
    %v2365 = vunpack.c.h.b16 %v2311
    %v2366 = vunpack.c.h.b16 %v2312
    %v2367 = vunpack.c.h.b16 %v2313
    %v2368 = vunpack.c.l.b16 %v2314
    %v2369 = vunpack.c.l.b16 %v2315
    %v2370 = vunpack.c.l.b16 %v2316
    %v2371 = vunpack.c.h.b16 %v2314
    %v2372 = vunpack.c.h.b16 %v2315
    %v2373 = vunpack.c.h.b16 %v2316
    %v2374 = vunpack.c.l.b16 %v2317
    %v2375 = vunpack.c.l.b16 %v2318
    %v2376 = vunpack.c.l.b16 %v2319
    %v2377 = vunpack.c.h.b16 %v2317
    %v2378 = vunpack.c.h.b16 %v2318
    %v2379 = vunpack.c.h.b16 %v2319
    %v2380 = vunpack.c.l.b16 %v2320
    %v2381 = vunpack.c.l.b16 %v2321
    %v2382 = vunpack.c.l.b16 %v2322
    %v2383 = vunpack.c.h.b16 %v2320
    %v2384 = vunpack.c.h.b16 %v2321
    %v2385 = vunpack.c.h.b16 %v2322
    %v2386 = vunpack.c.l.b16 %v2323
    %v2387 = vunpack.c.l.b16 %v2324
    %v2388 = vunpack.c.l.b16 %v2325
    %v2389 = vunpack.c.h.b16 %v2323
    %v2390 = vunpack.c.h.b16 %v2324
    %v2391 = vunpack.c.h.b16 %v2325
    %v2392 = vunpack.c.l.b16 %v2326
    %v2393 = vunpack.c.l.b16 %v2327
    %v2394 = vunpack.c.l.b16 %v2328
    %v2395 = vunpack.c.h.b16 %v2326
    %v2396 = vunpack.c.h.b16 %v2327
    %v2397 = vunpack.c.h.b16 %v2328
    %v2398 = vunpack.c.l.b16 %v2329
    %v2399 = vunpack.c.l.b16 %v2330
    %v2400 = vunpack.c.l.b16 %v2331
    %v2401 = vunpack.c.h.b16 %v2329
    %v2402 = vunpack.c.h.b16 %v2330
    %v2403 = vunpack.c.h.b16 %v2331
    %v2404 = vpack.c.b16 %v2357, %v2356
    %v2405 = vpack.c.b16 %v2358, %v2358
    %v2406 = vpack.c.b16 %v2360, %v2359
    %v2407 = vpack.c.b16 %v2361, %v2361
    %v2408 = vpack.c.b16 %v2363, %v2362
    %v2409 = vpack.c.b16 %v2364, %v2364
    %v2410 = vpack.c.b16 %v2366, %v2365
    %v2411 = vpack.c.b16 %v2367, %v2367
    %v2412 = vpack.c.b16 %v2369, %v2368
    %v2413 = vpack.c.b16 %v2370, %v2370
    %v2414 = vpack.c.b16 %v2372, %v2371
    %v2415 = vpack.c.b16 %v2373, %v2373
    %v2416 = vpack.c.b16 %v2375, %v2374
    %v2417 = vpack.c.b16 %v2376, %v2376
    %v2418 = vpack.c.b16 %v2378, %v2377
    %v2419 = vpack.c.b16 %v2379, %v2379
    %v2420 = vpack.c.b16 %v2381, %v2380
    %v2421 = vpack.c.b16 %v2382, %v2382
    %v2422 = vpack.c.b16 %v2384, %v2383
    %v2423 = vpack.c.b16 %v2385, %v2385
    %v2424 = vpack.c.b16 %v2387, %v2386
    %v2425 = vpack.c.b16 %v2388, %v2388
    %v2426 = vpack.c.b16 %v2390, %v2389
    %v2427 = vpack.c.b16 %v2391, %v2391
    %v2428 = vpack.c.b16 %v2393, %v2392
    %v2429 = vpack.c.b16 %v2394, %v2394
    %v2430 = vpack.c.b16 %v2396, %v2395
    %v2431 = vpack.c.b16 %v2397, %v2397
    %v2432 = vpack.c.b16 %v2399, %v2398
    %v2433 = vpack.c.b16 %v2400, %v2400
    %v2434 = vpack.c.b16 %v2402, %v2401
    %v2435 = vpack.c.b16 %v2403, %v2403
    %2468 = vst [vmem:[#allocation9] sm:$0xff] %v2404
    %2469 = vst [vmem:[#allocation9 + $0x8] sm:$0xf] %v2405
    %2470 = vst [vmem:[#allocation9 + $0xc] sm:$0xff] %v2406
    %2471 = vst [vmem:[#allocation9 + $0x14] sm:$0xf] %v2407
    %2472 = vst [vmem:[#allocation9 + $0x18] sm:$0xff] %v2408
    %2473 = vst [vmem:[#allocation9 + $0x20] sm:$0xf] %v2409
    %2474 = vst [vmem:[#allocation9 + $0x24] sm:$0xff] %v2410
    %2475 = vst [vmem:[#allocation9 + $0x2c] sm:$0xf] %v2411
    %2476 = vst [vmem:[#allocation9 + $0x30] sm:$0xff] %v2412
    %2477 = vst [vmem:[#allocation9 + $0x38] sm:$0xf] %v2413
    %2478 = vst [vmem:[#allocation9 + $0x3c] sm:$0xff] %v2414
    %2479 = vst [vmem:[#allocation9 + $0x44] sm:$0xf] %v2415
    %2480 = vst [vmem:[#allocation9 + $0x48] sm:$0xff] %v2416
    %2481 = vst [vmem:[#allocation9 + $0x50] sm:$0xf] %v2417
    %2482 = vst [vmem:[#allocation9 + $0x54] sm:$0xff] %v2418
    %2483 = vst [vmem:[#allocation9 + $0x5c] sm:$0xf] %v2419
    %2484 = vst [vmem:[#allocation9 + $0x60] sm:$0xff] %v2420
    %2485 = vst [vmem:[#allocation9 + $0x68] sm:$0xf] %v2421
    %2486 = vst [vmem:[#allocation9 + $0x6c] sm:$0xff] %v2422
    %2487 = vst [vmem:[#allocation9 + $0x74] sm:$0xf] %v2423
    %2488 = vst [vmem:[#allocation9 + $0x78] sm:$0xff] %v2424
    %2489 = vst [vmem:[#allocation9 + $0x80] sm:$0xf] %v2425
    %2490 = vst [vmem:[#allocation9 + $0x84] sm:$0xff] %v2426
    %2491 = vst [vmem:[#allocation9 + $0x8c] sm:$0xf] %v2427
    %2492 = vst [vmem:[#allocation9 + $0x90] sm:$0xff] %v2428
    %2493 = vst [vmem:[#allocation9 + $0x98] sm:$0xf] %v2429
    %2494 = vst [vmem:[#allocation9 + $0x9c] sm:$0xff] %v2430
    %2495 = vst [vmem:[#allocation9 + $0xa4] sm:$0xf] %v2431
    %2496 = vst [vmem:[#allocation9 + $0xa8] sm:$0xff] %v2432
    %2497 = vst [vmem:[#allocation9 + $0xb0] sm:$0xf] %v2433
    %2498 = vst [vmem:[#allocation9 + $0xb4] sm:$0xff] %v2434
    %2499 = vst [vmem:[#allocation9 + $0xbc] sm:$0xf] %v2435
    // Predicated region
    $region34: #{tpu_custom_call.1} parent=1 // pred_check
      _
    $region35: #{tpu_custom_call.1} parent=1 // pred_check_branch
      %2501 = sbr.rel (0) target = $region37
    $region36: #{tpu_custom_call.1} parent=1 // pred_region
      %s2503 = ssub.s32 3072, 3072
      %2504 = vsyncadd [#allocation4], %s2503
      %s2505 = sshll.u32 [#allocation8], 4
      %s2506 = int_to_ptr.vmem [resolvable:$true] %s2505
      %2511 = dma.vmem_to_hbm [thread:$0]  %s2506, 3072, %s5, [#allocation4], 64, 64, 4
    $region37: #{tpu_custom_call.1} parent=1 // pred_fallthru
      _
    // Predicated region
    $region38: #{tpu_custom_call.1} parent=1 // pred_check
      _
    $region39: #{tpu_custom_call.1} parent=1 // pred_check_branch
      %2513 = sbr.rel (0) target = $region41
    $region40: #{tpu_custom_call.1} parent=1 // pred_region
      %s2515 = ssub.s32 3072, 3072
      %2516 = vsyncadd [#allocation10], %s2515
      %s2517 = sshll.u32 [#allocation9], 4
      %s2518 = int_to_ptr.vmem [resolvable:$true] %s2517
      %2523 = dma.vmem_to_hbm [thread:$0]  %s2518, 3072, %s6, [#allocation10], 192, 192, 12
    $region41: #{tpu_custom_call.1} parent=1 // pred_fallthru
      _
    // Predicated region
    $region42: #{tpu_custom_call.1} parent=1 // pred_check
      _
    $region43: #{tpu_custom_call.1} parent=1 // pred_check_branch
      %2525 = sbr.rel (0) target = $region45
    $region44: #{tpu_custom_call.1} parent=1 // pred_region
      %2526 = dma.done [#allocation4], 3072
    $region45: #{tpu_custom_call.1} parent=1 // pred_fallthru
      _
    // Predicated region
    $region46: #{tpu_custom_call.1} parent=1 // pred_check
      _
    $region47: #{tpu_custom_call.1} parent=1 // pred_check_branch
      %2528 = sbr.rel (0) target = $region49
    $region48: #{tpu_custom_call.1} parent=1 // pred_region
      %2529 = dma.done [#allocation10], 3072
    $region49: #{tpu_custom_call.1} parent=1 // pred_fallthru
      _
    %2530 = vsyncpa [#allocation3], 1
    %2531 = vsyncpa [#allocation6], 1
    %2532 = vsyncpa [#allocation4], 1
    %2533 = vsyncpa [#allocation10], 1

</llo_original>
